<compile_context>
chip_gen: v7x
topology: tpu7x:2x2x1
jax: 0.10.0
libtpu: 0.0.40
codegen_flags: <defaults>
</compile_context>

<pallas_src>
import functools
import math

import numpy as np

import jax
import jax.numpy as jnp
from jax.experimental import pallas as pl
from jax.experimental.pallas import tpu as pltpu


def _round_up(x, m):
    return (x + m - 1) // m * m


def _conv_block_kernel(x_ref, mask_ref, *refs, num_layers, chans, dilations,
                       K, leak, NB, H, W, Hp, Wp, pad_buf, base, Mp):
    """Fused ConvBlock for one batch chunk, entirely in VMEM.

    x_ref    : (NB, Cin0, H, W)    NCHW input chunk
    mask_ref : (1, Mp) f32         1.0 inside the HxW image, 0.0 on halo / tail
    refs     : w_0, b_0, ..., w_{L-1}, b_{L-1}, o_ref, act_a, act_b, col
      w_i    : (Cout_i, K*K*Cin_i) im2col-packed weights
      b_i    : (Cout_i, 1)
      o_ref  : (1, Cout_last, Mp)  last-layer activation, flat padded coords
      act_a/b: (Cmax, Ltot) f32    ping-pong activation buffers (flat, padded)
      col    : (K*K*Cmax, Mp) f32  im2col scratch
    """
    w_refs = refs[0:2 * num_layers:2]
    b_refs = refs[1:2 * num_layers:2]
    o_ref = refs[2 * num_layers]
    act_a, act_b, col = refs[2 * num_layers + 1:]

    cin0 = chans[0]
    cent = (K - 1) // 2
    interior = mask_ref[...]                          # (1, Mp)

    # Zeroing the buffers once *is* the zero 'same' padding: the margins and
    # halo lanes are never written afterwards (interior writes are masked).
    act_a[...] = jnp.zeros_like(act_a)
    act_b[...] = jnp.zeros_like(act_b)

    # Place the NCHW input chunk into the flat padded layout:
    #   act_a[c, base + ((n*Hp + h + pad)*Wp + pad) + w] = x[n, c, h, w]
    for n in range(NB):
        for h in range(H):
            off = base + (n * Hp + h + pad_buf) * Wp + pad_buf
            act_a[0:cin0, off:off + W] = x_ref[n, :, h, :]

    bufs = (act_a, act_b)
    for layer in range(num_layers):
        cin = chans[layer]
        cout = chans[layer + 1]
        d = dilations[layer]
        kkc = K * K * cin
        src = bufs[layer % 2]

        # im2col: one lane-shifted slice per tap -> col[0:K*K*Cin, :].
        for kh in range(K):
            for kw in range(K):
                t = kh * K + kw
                shift = (kh - cent) * d * Wp + (kw - cent) * d
                col[t * cin:(t + 1) * cin, :] = (
                    src[0:cin, base + shift:base + shift + Mp])

        # One lane-dense MXU matmul per layer: (Cout, KKC) @ (KKC, Mp).
        y = jnp.dot(w_refs[layer][...], col[0:kkc, :],
                    preferred_element_type=jnp.float32)
        y = y + b_refs[layer][...]                    # (Cout, 1) lane broadcast

        if layer < num_layers - 1:
            y = jnp.where(y >= 0, y, leak * y)        # LeakyReLU
            dst = bufs[(layer + 1) % 2]
            # Masked write re-zeroes the halo so the next conv sees zero pad.
            dst[0:cout, base:base + Mp] = y * interior
        else:
            # Last conv: no activation; emit lane-dense (wrapper strips halo).
            o_ref[0] = (y * interior).astype(o_ref.dtype)


def conv_block_forward(x_nchw, params, dilations, leak=0.01, batch_block=None):
    """ConvBlock.forward: NCHW in, NCHW out. params: list of (w (Cout,Cin,K,K), b (Cout,))."""
    N, cin0, H, W = x_nchw.shape
    L = len(params)
    K = int(params[0][0].shape[-1])
    chans = [cin0] + [int(w.shape[0]) for w, _ in params]
    assert int(params[0][0].shape[1]) == cin0
    assert len(dilations) == L

    cent = (K - 1) // 2
    pads = [int(d) * cent for d in dilations]
    pad_buf = max(pads) if pads else 0
    Hp, Wp = H + 2 * pad_buf, W + 2 * pad_buf

    # Batch chunking: fold batch into the lane dim inside a chunk, keep a
    # 2-way "parallel" grid over chunks so v7x can use both TensorCores.
    if batch_block is None:
        batch_block = N // 2 if (N % 2 == 0 and N >= 2) else N
    assert N % batch_block == 0
    NB = batch_block
    num_chunks = N // NB

    Mflat = NB * Hp * Wp
    Mp = _round_up(Mflat, 128)                 # lane-dense compute/store width
    halo = pad_buf * Wp + pad_buf              # max |tap shift| in flat coords
    base = _round_up(max(halo, 1), 128)        # 128-aligned interior start
    Ltot = _round_up(base + Mp + halo, 128)
    cmax = max(chans)

    # Interior mask over flat padded coordinates (1 inside the HxW image).
    qs = np.arange(Mflat)
    rem = qs % (Hp * Wp)
    hh = rem // Wp
    ww = rem % Wp
    valid = ((hh >= pad_buf) & (hh < pad_buf + H)
             & (ww >= pad_buf) & (ww < pad_buf + W))
    mask_np = np.zeros((1, Mp), np.float32)
    mask_np[0, :Mflat] = valid.astype(np.float32)
    mask = jnp.asarray(mask_np)

    # Pack weights once to the matmul-ready im2col layout (grid-invariant).
    flat_params = []
    in_specs = [
        pl.BlockSpec((NB, cin0, H, W), lambda i: (i, 0, 0, 0)),
        pl.BlockSpec((1, Mp), lambda i: (0, 0)),
    ]
    for w, b in params:
        cout, cin = int(w.shape[0]), int(w.shape[1])
        w_mat = jnp.transpose(w, (0, 2, 3, 1)).reshape(cout, K * K * cin)
        b_col = b.reshape(cout, 1)
        flat_params += [w_mat, b_col]
        in_specs += [pl.BlockSpec((cout, K * K * cin), lambda i: (0, 0)),
                     pl.BlockSpec((cout, 1), lambda i: (0, 0))]

    kernel = functools.partial(
        _conv_block_kernel, num_layers=L, chans=tuple(chans),
        dilations=tuple(int(d) for d in dilations), K=K, leak=leak, NB=NB,
        H=H, W=W, Hp=Hp, Wp=Wp, pad_buf=pad_buf, base=base, Mp=Mp)

    out_flat = pl.pallas_call(
        kernel,
        out_shape=jax.ShapeDtypeStruct((num_chunks, chans[-1], Mp), jnp.float32),
        grid_spec=pltpu.PrefetchScalarGridSpec(
            num_scalar_prefetch=0,
            grid=(num_chunks,),
            in_specs=in_specs,
            out_specs=pl.BlockSpec((1, chans[-1], Mp), lambda i: (i, 0, 0)),
            scratch_shapes=[
                pltpu.VMEM((cmax, Ltot), jnp.float32),        # act ping
                pltpu.VMEM((cmax, Ltot), jnp.float32),        # act pong
                pltpu.VMEM((K * K * cmax, Mp), jnp.float32),  # im2col
            ]),
        compiler_params=pltpu.CompilerParams(
            dimension_semantics=("parallel",)),
    )(x_nchw, mask, *flat_params)

    # Strip halo / restore NCHW (layout plumbing, done once in XLA).
    out = out_flat[:, :, :Mflat].reshape(num_chunks, chans[-1], NB, Hp, Wp)
    out = out[:, :, :, pad_buf:pad_buf + H, pad_buf:pad_buf + W]
    out = jnp.transpose(out, (0, 2, 1, 3, 4)).reshape(N, chans[-1], H, W)
    return out


def init_conv_block_params(key, num_convs, num_filters, kernel_size,
                           num_inputs=2, num_outputs=2, leak=0.01):
    """He-normal-style init, PyTorch Conv2d layout: w (Cout, Cin, K, K), b (Cout,)."""
    params = []
    in_ch = num_inputs
    for i in range(num_convs):
        out_ch = num_filters if i < num_convs - 1 else num_outputs
        key, wk, bk = jax.random.split(key, 3)
        fan_in = kernel_size * kernel_size * in_ch
        std = math.sqrt(2.0 / ((1.0 + leak ** 2) * fan_in))
        w = jax.random.normal(wk, (out_ch, in_ch, kernel_size, kernel_size),
                              jnp.float32) * std
        b = jax.random.normal(bk, (out_ch,), jnp.float32) * 0.1
        params.append((w, b))
        in_ch = out_ch
    return params


def _reference_forward(x, params, dilations, leak=0.01):
    """Pure-JAX reference (lax.conv_general_dilated) for the correctness check."""
    n_layers = len(params)
    for i, (w, b) in enumerate(params):
        d = int(dilations[i])
        k = int(w.shape[-1])
        pad = d * (k - 1) // 2
        y = jax.lax.conv_general_dilated(
            x, w, window_strides=(1, 1),
            padding=((pad, pad), (pad, pad)),
            rhs_dilation=(d, d),
            dimension_numbers=("NCHW", "OIHW", "NCHW"))
        y = y + b.reshape(1, -1, 1, 1)
        if i < n_layers - 1:
            y = jnp.where(y >= 0, y, leak * y)
        x = y
    return x


if __name__ == "__main__":
    # ConvBlock config: num_convs=3, num_filters=16, kernel_size=3,
    # relu_leakiness=0.01, dilations=[1,1,1], padding='zero',
    # num_inputs=2, num_outputs=2, final_act=False.
    num_convs = 3
    num_filters = 16
    kernel_size = 3
    leak = 0.01
    dilations = (1, 1, 1)

    key = jax.random.PRNGKey(0)
    key, xk, pk = jax.random.split(key, 3)

    # NCHW input: batch 2, 2 channels (complex MR image as 2 real channels), 16x16.
    x = jax.random.normal(xk, (2, 2, 16, 16), jnp.float32)
    params = init_conv_block_params(pk, num_convs, num_filters, kernel_size,
                                    num_inputs=2, num_outputs=2, leak=leak)

    fwd = jax.jit(functools.partial(conv_block_forward,
                                    dilations=dilations, leak=leak))
    out = jax.block_until_ready(fwd(x, params))

    ref = _reference_forward(x, params, dilations, leak=leak)
    assert out.shape == (2, 2, 16, 16)
    assert jnp.allclose(out, ref, atol=2e-4, rtol=2e-4), "mismatch vs reference"

    print("KERNEL_OK")
</pallas_src>

<mosaic_0001>
module attributes {stable_mosaic.version = 11 : i64} {
  func.func @_conv_block_kernel(%arg0: i32, %arg1: memref<1x2x16x16xf32, #tpu.memory_space<vmem>>, %arg2: memref<1x384xf32, #tpu.memory_space<vmem>>, %arg3: memref<16x18xf32, #tpu.memory_space<vmem>>, %arg4: memref<16x1xf32, #tpu.memory_space<vmem>>, %arg5: memref<16x144xf32, #tpu.memory_space<vmem>>, %arg6: memref<16x1xf32, #tpu.memory_space<vmem>>, %arg7: memref<2x144xf32, #tpu.memory_space<vmem>>, %arg8: memref<2x1xf32, #tpu.memory_space<vmem>>, %arg9: memref<1x2x384xf32, #tpu.memory_space<vmem>>, %arg10: memref<16x640xf32, #tpu.memory_space<vmem>>, %arg11: memref<16x640xf32, #tpu.memory_space<vmem>>, %arg12: memref<144x384xf32, #tpu.memory_space<vmem>>) attributes {dimension_semantics = [#tpu.dimension_semantics<parallel>], iteration_bounds = array<i64: 2>, scalar_prefetch = 0 : i64, scratch_operands = 3 : i64, tpu.core_type = #tpu.core_type<tc>, window_params = [{transform_indices = @transform_0, window_bounds = array<i64: 1, 2, 16, 16>}, {pipeline_mode = #tpu.pipeline_mode<synchronous>, transform_indices = @transform_1, window_bounds = array<i64: 1, 384>}, {pipeline_mode = #tpu.pipeline_mode<synchronous>, transform_indices = @transform_2, window_bounds = array<i64: 16, 18>}, {pipeline_mode = #tpu.pipeline_mode<synchronous>, transform_indices = @transform_3, window_bounds = array<i64: 16, 1>}, {pipeline_mode = #tpu.pipeline_mode<synchronous>, transform_indices = @transform_4, window_bounds = array<i64: 16, 144>}, {pipeline_mode = #tpu.pipeline_mode<synchronous>, transform_indices = @transform_5, window_bounds = array<i64: 16, 1>}, {pipeline_mode = #tpu.pipeline_mode<synchronous>, transform_indices = @transform_6, window_bounds = array<i64: 2, 144>}, {pipeline_mode = #tpu.pipeline_mode<synchronous>, transform_indices = @transform_7, window_bounds = array<i64: 2, 1>}, {transform_indices = @transform_8, window_bounds = array<i64: 1, 2, 384>}]} {
    %c0 = arith.constant 0 : index
    %c0_0 = arith.constant 0 : index
    %0 = vector.load %arg2[%c0, %c0_0] : memref<1x384xf32, #tpu.memory_space<vmem>>, vector<1x384xf32>
    %cst = arith.constant 0.000000e+00 : f32
    %1 = vector.broadcast %cst : f32 to vector<16x640xf32>
    %c0_1 = arith.constant 0 : index
    %c0_2 = arith.constant 0 : index
    %2 = vector.load %arg10[%c0_1, %c0_2] : memref<16x640xf32, #tpu.memory_space<vmem>>, vector<16x640xf32>
    tpu.vector_store %arg10[%c0_1, %c0_2], %1 {strides = array<i32>} : memref<16x640xf32, #tpu.memory_space<vmem>>, vector<16x640xf32>,
    %cst_3 = arith.constant 0.000000e+00 : f32
    %3 = vector.broadcast %cst_3 : f32 to vector<16x640xf32>
    %c0_4 = arith.constant 0 : index
    %c0_5 = arith.constant 0 : index
    %4 = vector.load %arg11[%c0_4, %c0_5] : memref<16x640xf32, #tpu.memory_space<vmem>>, vector<16x640xf32>
    tpu.vector_store %arg11[%c0_4, %c0_5], %3 {strides = array<i32>} : memref<16x640xf32, #tpu.memory_space<vmem>>, vector<16x640xf32>,
    %c0_6 = arith.constant 0 : index
    %c0_7 = arith.constant 0 : index
    %c0_8 = arith.constant 0 : index
    %c0_9 = arith.constant 0 : index
    %5 = vector.load %arg1[%c0_6, %c0_7, %c0_8, %c0_9] : memref<1x2x16x16xf32, #tpu.memory_space<vmem>>, vector<1x2x1x16xf32>
    %6 = vector.shape_cast %5 : vector<1x2x1x16xf32> to vector<2x16xf32>
    %c0_10 = arith.constant 0 : index
    %c147 = arith.constant 147 : index
    %7 = vector.load %arg10[%c0_10, %c147] : memref<16x640xf32, #tpu.memory_space<vmem>>, vector<2x16xf32>
    tpu.vector_store %arg10[%c0_10, %c147], %6 {strides = array<i32>} : memref<16x640xf32, #tpu.memory_space<vmem>>, vector<2x16xf32>,
    %c0_11 = arith.constant 0 : index
    %c0_12 = arith.constant 0 : index
    %c1 = arith.constant 1 : index
    %c0_13 = arith.constant 0 : index
    %8 = vector.load %arg1[%c0_11, %c0_12, %c1, %c0_13] : memref<1x2x16x16xf32, #tpu.memory_space<vmem>>, vector<1x2x1x16xf32>
    %9 = vector.shape_cast %8 : vector<1x2x1x16xf32> to vector<2x16xf32>
    %c0_14 = arith.constant 0 : index
    %c165 = arith.constant 165 : index
    %10 = vector.load %arg10[%c0_14, %c165] : memref<16x640xf32, #tpu.memory_space<vmem>>, vector<2x16xf32>
    tpu.vector_store %arg10[%c0_14, %c165], %9 {strides = array<i32>} : memref<16x640xf32, #tpu.memory_space<vmem>>, vector<2x16xf32>,
    %c0_15 = arith.constant 0 : index
    %c0_16 = arith.constant 0 : index
    %c2 = arith.constant 2 : index
    %c0_17 = arith.constant 0 : index
    %11 = vector.load %arg1[%c0_15, %c0_16, %c2, %c0_17] : memref<1x2x16x16xf32, #tpu.memory_space<vmem>>, vector<1x2x1x16xf32>
    %12 = vector.shape_cast %11 : vector<1x2x1x16xf32> to vector<2x16xf32>
    %c0_18 = arith.constant 0 : index
    %c183 = arith.constant 183 : index
    %13 = vector.load %arg10[%c0_18, %c183] : memref<16x640xf32, #tpu.memory_space<vmem>>, vector<2x16xf32>
    tpu.vector_store %arg10[%c0_18, %c183], %12 {strides = array<i32>} : memref<16x640xf32, #tpu.memory_space<vmem>>, vector<2x16xf32>,
    %c0_19 = arith.constant 0 : index
    %c0_20 = arith.constant 0 : index
    %c3 = arith.constant 3 : index
    %c0_21 = arith.constant 0 : index
    %14 = vector.load %arg1[%c0_19, %c0_20, %c3, %c0_21] : memref<1x2x16x16xf32, #tpu.memory_space<vmem>>, vector<1x2x1x16xf32>
    %15 = vector.shape_cast %14 : vector<1x2x1x16xf32> to vector<2x16xf32>
    %c0_22 = arith.constant 0 : index
    %c201 = arith.constant 201 : index
    %16 = vector.load %arg10[%c0_22, %c201] : memref<16x640xf32, #tpu.memory_space<vmem>>, vector<2x16xf32>
    tpu.vector_store %arg10[%c0_22, %c201], %15 {strides = array<i32>} : memref<16x640xf32, #tpu.memory_space<vmem>>, vector<2x16xf32>,
    %c0_23 = arith.constant 0 : index
    %c0_24 = arith.constant 0 : index
    %c4 = arith.constant 4 : index
    %c0_25 = arith.constant 0 : index
    %17 = vector.load %arg1[%c0_23, %c0_24, %c4, %c0_25] : memref<1x2x16x16xf32, #tpu.memory_space<vmem>>, vector<1x2x1x16xf32>
    %18 = vector.shape_cast %17 : vector<1x2x1x16xf32> to vector<2x16xf32>
    %c0_26 = arith.constant 0 : index
    %c219 = arith.constant 219 : index
    %19 = vector.load %arg10[%c0_26, %c219] : memref<16x640xf32, #tpu.memory_space<vmem>>, vector<2x16xf32>
    tpu.vector_store %arg10[%c0_26, %c219], %18 {strides = array<i32>} : memref<16x640xf32, #tpu.memory_space<vmem>>, vector<2x16xf32>,
    %c0_27 = arith.constant 0 : index
    %c0_28 = arith.constant 0 : index
    %c5 = arith.constant 5 : index
    %c0_29 = arith.constant 0 : index
    %20 = vector.load %arg1[%c0_27, %c0_28, %c5, %c0_29] : memref<1x2x16x16xf32, #tpu.memory_space<vmem>>, vector<1x2x1x16xf32>
    %21 = vector.shape_cast %20 : vector<1x2x1x16xf32> to vector<2x16xf32>
    %c0_30 = arith.constant 0 : index
    %c237 = arith.constant 237 : index
    %22 = vector.load %arg10[%c0_30, %c237] : memref<16x640xf32, #tpu.memory_space<vmem>>, vector<2x16xf32>
    tpu.vector_store %arg10[%c0_30, %c237], %21 {strides = array<i32>} : memref<16x640xf32, #tpu.memory_space<vmem>>, vector<2x16xf32>,
    %c0_31 = arith.constant 0 : index
    %c0_32 = arith.constant 0 : index
    %c6 = arith.constant 6 : index
    %c0_33 = arith.constant 0 : index
    %23 = vector.load %arg1[%c0_31, %c0_32, %c6, %c0_33] : memref<1x2x16x16xf32, #tpu.memory_space<vmem>>, vector<1x2x1x16xf32>
    %24 = vector.shape_cast %23 : vector<1x2x1x16xf32> to vector<2x16xf32>
    %c0_34 = arith.constant 0 : index
    %c255 = arith.constant 255 : index
    %25 = vector.load %arg10[%c0_34, %c255] : memref<16x640xf32, #tpu.memory_space<vmem>>, vector<2x16xf32>
    tpu.vector_store %arg10[%c0_34, %c255], %24 {strides = array<i32>} : memref<16x640xf32, #tpu.memory_space<vmem>>, vector<2x16xf32>,
    %c0_35 = arith.constant 0 : index
    %c0_36 = arith.constant 0 : index
    %c7 = arith.constant 7 : index
    %c0_37 = arith.constant 0 : index
    %26 = vector.load %arg1[%c0_35, %c0_36, %c7, %c0_37] : memref<1x2x16x16xf32, #tpu.memory_space<vmem>>, vector<1x2x1x16xf32>
    %27 = vector.shape_cast %26 : vector<1x2x1x16xf32> to vector<2x16xf32>
    %c0_38 = arith.constant 0 : index
    %c273 = arith.constant 273 : index
    %28 = vector.load %arg10[%c0_38, %c273] : memref<16x640xf32, #tpu.memory_space<vmem>>, vector<2x16xf32>
    tpu.vector_store %arg10[%c0_38, %c273], %27 {strides = array<i32>} : memref<16x640xf32, #tpu.memory_space<vmem>>, vector<2x16xf32>,
    %c0_39 = arith.constant 0 : index
    %c0_40 = arith.constant 0 : index
    %c8 = arith.constant 8 : index
    %c0_41 = arith.constant 0 : index
    %29 = vector.load %arg1[%c0_39, %c0_40, %c8, %c0_41] : memref<1x2x16x16xf32, #tpu.memory_space<vmem>>, vector<1x2x1x16xf32>
    %30 = vector.shape_cast %29 : vector<1x2x1x16xf32> to vector<2x16xf32>
    %c0_42 = arith.constant 0 : index
    %c291 = arith.constant 291 : index
    %31 = vector.load %arg10[%c0_42, %c291] : memref<16x640xf32, #tpu.memory_space<vmem>>, vector<2x16xf32>
    tpu.vector_store %arg10[%c0_42, %c291], %30 {strides = array<i32>} : memref<16x640xf32, #tpu.memory_space<vmem>>, vector<2x16xf32>,
    %c0_43 = arith.constant 0 : index
    %c0_44 = arith.constant 0 : index
    %c9 = arith.constant 9 : index
    %c0_45 = arith.constant 0 : index
    %32 = vector.load %arg1[%c0_43, %c0_44, %c9, %c0_45] : memref<1x2x16x16xf32, #tpu.memory_space<vmem>>, vector<1x2x1x16xf32>
    %33 = vector.shape_cast %32 : vector<1x2x1x16xf32> to vector<2x16xf32>
    %c0_46 = arith.constant 0 : index
    %c309 = arith.constant 309 : index
    %34 = vector.load %arg10[%c0_46, %c309] : memref<16x640xf32, #tpu.memory_space<vmem>>, vector<2x16xf32>
    tpu.vector_store %arg10[%c0_46, %c309], %33 {strides = array<i32>} : memref<16x640xf32, #tpu.memory_space<vmem>>, vector<2x16xf32>,
    %c0_47 = arith.constant 0 : index
    %c0_48 = arith.constant 0 : index
    %c10 = arith.constant 10 : index
    %c0_49 = arith.constant 0 : index
    %35 = vector.load %arg1[%c0_47, %c0_48, %c10, %c0_49] : memref<1x2x16x16xf32, #tpu.memory_space<vmem>>, vector<1x2x1x16xf32>
    %36 = vector.shape_cast %35 : vector<1x2x1x16xf32> to vector<2x16xf32>
    %c0_50 = arith.constant 0 : index
    %c327 = arith.constant 327 : index
    %37 = vector.load %arg10[%c0_50, %c327] : memref<16x640xf32, #tpu.memory_space<vmem>>, vector<2x16xf32>
    tpu.vector_store %arg10[%c0_50, %c327], %36 {strides = array<i32>} : memref<16x640xf32, #tpu.memory_space<vmem>>, vector<2x16xf32>,
    %c0_51 = arith.constant 0 : index
    %c0_52 = arith.constant 0 : index
    %c11 = arith.constant 11 : index
    %c0_53 = arith.constant 0 : index
    %38 = vector.load %arg1[%c0_51, %c0_52, %c11, %c0_53] : memref<1x2x16x16xf32, #tpu.memory_space<vmem>>, vector<1x2x1x16xf32>
    %39 = vector.shape_cast %38 : vector<1x2x1x16xf32> to vector<2x16xf32>
    %c0_54 = arith.constant 0 : index
    %c345 = arith.constant 345 : index
    %40 = vector.load %arg10[%c0_54, %c345] : memref<16x640xf32, #tpu.memory_space<vmem>>, vector<2x16xf32>
    tpu.vector_store %arg10[%c0_54, %c345], %39 {strides = array<i32>} : memref<16x640xf32, #tpu.memory_space<vmem>>, vector<2x16xf32>,
    %c0_55 = arith.constant 0 : index
    %c0_56 = arith.constant 0 : index
    %c12 = arith.constant 12 : index
    %c0_57 = arith.constant 0 : index
    %41 = vector.load %arg1[%c0_55, %c0_56, %c12, %c0_57] : memref<1x2x16x16xf32, #tpu.memory_space<vmem>>, vector<1x2x1x16xf32>
    %42 = vector.shape_cast %41 : vector<1x2x1x16xf32> to vector<2x16xf32>
    %c0_58 = arith.constant 0 : index
    %c363 = arith.constant 363 : index
    %43 = vector.load %arg10[%c0_58, %c363] : memref<16x640xf32, #tpu.memory_space<vmem>>, vector<2x16xf32>
    tpu.vector_store %arg10[%c0_58, %c363], %42 {strides = array<i32>} : memref<16x640xf32, #tpu.memory_space<vmem>>, vector<2x16xf32>,
    %c0_59 = arith.constant 0 : index
    %c0_60 = arith.constant 0 : index
    %c13 = arith.constant 13 : index
    %c0_61 = arith.constant 0 : index
    %44 = vector.load %arg1[%c0_59, %c0_60, %c13, %c0_61] : memref<1x2x16x16xf32, #tpu.memory_space<vmem>>, vector<1x2x1x16xf32>
    %45 = vector.shape_cast %44 : vector<1x2x1x16xf32> to vector<2x16xf32>
    %c0_62 = arith.constant 0 : index
    %c381 = arith.constant 381 : index
    %46 = vector.load %arg10[%c0_62, %c381] : memref<16x640xf32, #tpu.memory_space<vmem>>, vector<2x16xf32>
    tpu.vector_store %arg10[%c0_62, %c381], %45 {strides = array<i32>} : memref<16x640xf32, #tpu.memory_space<vmem>>, vector<2x16xf32>,
    %c0_63 = arith.constant 0 : index
    %c0_64 = arith.constant 0 : index
    %c14 = arith.constant 14 : index
    %c0_65 = arith.constant 0 : index
    %47 = vector.load %arg1[%c0_63, %c0_64, %c14, %c0_65] : memref<1x2x16x16xf32, #tpu.memory_space<vmem>>, vector<1x2x1x16xf32>
    %48 = vector.shape_cast %47 : vector<1x2x1x16xf32> to vector<2x16xf32>
    %c0_66 = arith.constant 0 : index
    %c399 = arith.constant 399 : index
    %49 = vector.load %arg10[%c0_66, %c399] : memref<16x640xf32, #tpu.memory_space<vmem>>, vector<2x16xf32>
    tpu.vector_store %arg10[%c0_66, %c399], %48 {strides = array<i32>} : memref<16x640xf32, #tpu.memory_space<vmem>>, vector<2x16xf32>,
    %c0_67 = arith.constant 0 : index
    %c0_68 = arith.constant 0 : index
    %c15 = arith.constant 15 : index
    %c0_69 = arith.constant 0 : index
    %50 = vector.load %arg1[%c0_67, %c0_68, %c15, %c0_69] : memref<1x2x16x16xf32, #tpu.memory_space<vmem>>, vector<1x2x1x16xf32>
    %51 = vector.shape_cast %50 : vector<1x2x1x16xf32> to vector<2x16xf32>
    %c0_70 = arith.constant 0 : index
    %c417 = arith.constant 417 : index
    %52 = vector.load %arg10[%c0_70, %c417] : memref<16x640xf32, #tpu.memory_space<vmem>>, vector<2x16xf32>
    tpu.vector_store %arg10[%c0_70, %c417], %51 {strides = array<i32>} : memref<16x640xf32, #tpu.memory_space<vmem>>, vector<2x16xf32>,
    %c0_71 = arith.constant 0 : index
    %c109 = arith.constant 109 : index
    %53 = vector.load %arg10[%c0_71, %c109] : memref<16x640xf32, #tpu.memory_space<vmem>>, vector<2x384xf32>
    %c0_72 = arith.constant 0 : index
    %c0_73 = arith.constant 0 : index
    %54 = vector.load %arg12[%c0_72, %c0_73] : memref<144x384xf32, #tpu.memory_space<vmem>>, vector<2x384xf32>
    tpu.vector_store %arg12[%c0_72, %c0_73], %53 {strides = array<i32>} : memref<144x384xf32, #tpu.memory_space<vmem>>, vector<2x384xf32>,
    %c0_74 = arith.constant 0 : index
    %c110 = arith.constant 110 : index
    %55 = vector.load %arg10[%c0_74, %c110] : memref<16x640xf32, #tpu.memory_space<vmem>>, vector<2x384xf32>
    %c2_75 = arith.constant 2 : index
    %c0_76 = arith.constant 0 : index
    %56 = vector.load %arg12[%c2_75, %c0_76] : memref<144x384xf32, #tpu.memory_space<vmem>>, vector<2x384xf32>
    tpu.vector_store %arg12[%c2_75, %c0_76], %55 {strides = array<i32>} : memref<144x384xf32, #tpu.memory_space<vmem>>, vector<2x384xf32>,
    %c0_77 = arith.constant 0 : index
    %c111 = arith.constant 111 : index
    %57 = vector.load %arg10[%c0_77, %c111] : memref<16x640xf32, #tpu.memory_space<vmem>>, vector<2x384xf32>
    %c4_78 = arith.constant 4 : index
    %c0_79 = arith.constant 0 : index
    %58 = vector.load %arg12[%c4_78, %c0_79] : memref<144x384xf32, #tpu.memory_space<vmem>>, vector<2x384xf32>
    tpu.vector_store %arg12[%c4_78, %c0_79], %57 {strides = array<i32>} : memref<144x384xf32, #tpu.memory_space<vmem>>, vector<2x384xf32>,
    %c0_80 = arith.constant 0 : index
    %c127 = arith.constant 127 : index
    %59 = vector.load %arg10[%c0_80, %c127] : memref<16x640xf32, #tpu.memory_space<vmem>>, vector<2x384xf32>
    %c6_81 = arith.constant 6 : index
    %c0_82 = arith.constant 0 : index
    %60 = vector.load %arg12[%c6_81, %c0_82] : memref<144x384xf32, #tpu.memory_space<vmem>>, vector<2x384xf32>
    tpu.vector_store %arg12[%c6_81, %c0_82], %59 {strides = array<i32>} : memref<144x384xf32, #tpu.memory_space<vmem>>, vector<2x384xf32>,
    %c0_83 = arith.constant 0 : index
    %c128 = arith.constant 128 : index
    %61 = vector.load %arg10[%c0_83, %c128] : memref<16x640xf32, #tpu.memory_space<vmem>>, vector<2x384xf32>
    %c8_84 = arith.constant 8 : index
    %c0_85 = arith.constant 0 : index
    %62 = vector.load %arg12[%c8_84, %c0_85] : memref<144x384xf32, #tpu.memory_space<vmem>>, vector<2x384xf32>
    tpu.vector_store %arg12[%c8_84, %c0_85], %61 {strides = array<i32>} : memref<144x384xf32, #tpu.memory_space<vmem>>, vector<2x384xf32>,
    %c0_86 = arith.constant 0 : index
    %c129 = arith.constant 129 : index
    %63 = vector.load %arg10[%c0_86, %c129] : memref<16x640xf32, #tpu.memory_space<vmem>>, vector<2x384xf32>
    %c10_87 = arith.constant 10 : index
    %c0_88 = arith.constant 0 : index
    %64 = vector.load %arg12[%c10_87, %c0_88] : memref<144x384xf32, #tpu.memory_space<vmem>>, vector<2x384xf32>
    tpu.vector_store %arg12[%c10_87, %c0_88], %63 {strides = array<i32>} : memref<144x384xf32, #tpu.memory_space<vmem>>, vector<2x384xf32>,
    %c0_89 = arith.constant 0 : index
    %c145 = arith.constant 145 : index
    %65 = vector.load %arg10[%c0_89, %c145] : memref<16x640xf32, #tpu.memory_space<vmem>>, vector<2x384xf32>
    %c12_90 = arith.constant 12 : index
    %c0_91 = arith.constant 0 : index
    %66 = vector.load %arg12[%c12_90, %c0_91] : memref<144x384xf32, #tpu.memory_space<vmem>>, vector<2x384xf32>
    tpu.vector_store %arg12[%c12_90, %c0_91], %65 {strides = array<i32>} : memref<144x384xf32, #tpu.memory_space<vmem>>, vector<2x384xf32>,
    %c0_92 = arith.constant 0 : index
    %c146 = arith.constant 146 : index
    %67 = vector.load %arg10[%c0_92, %c146] : memref<16x640xf32, #tpu.memory_space<vmem>>, vector<2x384xf32>
    %c14_93 = arith.constant 14 : index
    %c0_94 = arith.constant 0 : index
    %68 = vector.load %arg12[%c14_93, %c0_94] : memref<144x384xf32, #tpu.memory_space<vmem>>, vector<2x384xf32>
    tpu.vector_store %arg12[%c14_93, %c0_94], %67 {strides = array<i32>} : memref<144x384xf32, #tpu.memory_space<vmem>>, vector<2x384xf32>,
    %c0_95 = arith.constant 0 : index
    %c147_96 = arith.constant 147 : index
    %69 = vector.load %arg10[%c0_95, %c147_96] : memref<16x640xf32, #tpu.memory_space<vmem>>, vector<2x384xf32>
    %c16 = arith.constant 16 : index
    %c0_97 = arith.constant 0 : index
    %70 = vector.load %arg12[%c16, %c0_97] : memref<144x384xf32, #tpu.memory_space<vmem>>, vector<2x384xf32>
    tpu.vector_store %arg12[%c16, %c0_97], %69 {strides = array<i32>} : memref<144x384xf32, #tpu.memory_space<vmem>>, vector<2x384xf32>,
    %c0_98 = arith.constant 0 : index
    %c0_99 = arith.constant 0 : index
    %71 = vector.load %arg3[%c0_98, %c0_99] : memref<16x18xf32, #tpu.memory_space<vmem>>, vector<16x18xf32>
    %c0_100 = arith.constant 0 : index
    %c0_101 = arith.constant 0 : index
    %72 = vector.load %arg12[%c0_100, %c0_101] : memref<144x384xf32, #tpu.memory_space<vmem>>, vector<18x384xf32>
    %cst_102 = arith.constant dense<0.000000e+00> : vector<16x384xf32>
    %73 = tpu.matmul %71, %72, %cst_102 {dimension_numbers = #tpu.dot_dimension_numbers<[1], [0], [0], [1], [0, 0, 1, 1], [], []>} : vector<16x18xf32>, vector<18x384xf32>, vector<16x384xf32> -> vector<16x384xf32>
    %c0_103 = arith.constant 0 : index
    %c0_104 = arith.constant 0 : index
    %74 = vector.load %arg4[%c0_103, %c0_104] : memref<16x1xf32, #tpu.memory_space<vmem>>, vector<16x1xf32>
    %75 = vector.broadcast %74 : vector<16x1xf32> to vector<16x384xf32>
    %76 = arith.addf %73, %75 : vector<16x384xf32>
    %cst_105 = arith.constant 0.000000e+00 : f32
    %77 = vector.broadcast %cst_105 : f32 to vector<16x384xf32>
    %78 = arith.cmpf oge, %76, %77 : vector<16x384xf32>
    %cst_106 = arith.constant 0.00999999977 : f32
    %79 = vector.broadcast %cst_106 : f32 to vector<16x384xf32>
    %80 = arith.mulf %79, %76 : vector<16x384xf32>
    %81 = arith.select %78, %76, %80 : vector<16x384xi1>, vector<16x384xf32>
    %82 = vector.broadcast %0 : vector<1x384xf32> to vector<16x384xf32>
    %83 = arith.mulf %81, %82 : vector<16x384xf32>
    %c0_107 = arith.constant 0 : index
    %c128_108 = arith.constant 128 : index
    %84 = vector.load %arg11[%c0_107, %c128_108] : memref<16x640xf32, #tpu.memory_space<vmem>>, vector<16x384xf32>
    tpu.vector_store %arg11[%c0_107, %c128_108], %83 {strides = array<i32>} : memref<16x640xf32, #tpu.memory_space<vmem>>, vector<16x384xf32>,
    %c0_109 = arith.constant 0 : index
    %c109_110 = arith.constant 109 : index
    %85 = vector.load %arg11[%c0_109, %c109_110] : memref<16x640xf32, #tpu.memory_space<vmem>>, vector<16x384xf32>
    %c0_111 = arith.constant 0 : index
    %c0_112 = arith.constant 0 : index
    %86 = vector.load %arg12[%c0_111, %c0_112] : memref<144x384xf32, #tpu.memory_space<vmem>>, vector<16x384xf32>
    tpu.vector_store %arg12[%c0_111, %c0_112], %85 {strides = array<i32>} : memref<144x384xf32, #tpu.memory_space<vmem>>, vector<16x384xf32>,
    %c0_113 = arith.constant 0 : index
    %c110_114 = arith.constant 110 : index
    %87 = vector.load %arg11[%c0_113, %c110_114] : memref<16x640xf32, #tpu.memory_space<vmem>>, vector<16x384xf32>
    %c16_115 = arith.constant 16 : index
    %c0_116 = arith.constant 0 : index
    %88 = vector.load %arg12[%c16_115, %c0_116] : memref<144x384xf32, #tpu.memory_space<vmem>>, vector<16x384xf32>
    tpu.vector_store %arg12[%c16_115, %c0_116], %87 {strides = array<i32>} : memref<144x384xf32, #tpu.memory_space<vmem>>, vector<16x384xf32>,
    %c0_117 = arith.constant 0 : index
    %c111_118 = arith.constant 111 : index
    %89 = vector.load %arg11[%c0_117, %c111_118] : memref<16x640xf32, #tpu.memory_space<vmem>>, vector<16x384xf32>
    %c32 = arith.constant 32 : index
    %c0_119 = arith.constant 0 : index
    %90 = vector.load %arg12[%c32, %c0_119] : memref<144x384xf32, #tpu.memory_space<vmem>>, vector<16x384xf32>
    tpu.vector_store %arg12[%c32, %c0_119], %89 {strides = array<i32>} : memref<144x384xf32, #tpu.memory_space<vmem>>, vector<16x384xf32>,
    %c0_120 = arith.constant 0 : index
    %c127_121 = arith.constant 127 : index
    %91 = vector.load %arg11[%c0_120, %c127_121] : memref<16x640xf32, #tpu.memory_space<vmem>>, vector<16x384xf32>
    %c48 = arith.constant 48 : index
    %c0_122 = arith.constant 0 : index
    %92 = vector.load %arg12[%c48, %c0_122] : memref<144x384xf32, #tpu.memory_space<vmem>>, vector<16x384xf32>
    tpu.vector_store %arg12[%c48, %c0_122], %91 {strides = array<i32>} : memref<144x384xf32, #tpu.memory_space<vmem>>, vector<16x384xf32>,
    %c0_123 = arith.constant 0 : index
    %c128_124 = arith.constant 128 : index
    %93 = vector.load %arg11[%c0_123, %c128_124] : memref<16x640xf32, #tpu.memory_space<vmem>>, vector<16x384xf32>
    %c64 = arith.constant 64 : index
    %c0_125 = arith.constant 0 : index
    %94 = vector.load %arg12[%c64, %c0_125] : memref<144x384xf32, #tpu.memory_space<vmem>>, vector<16x384xf32>
    tpu.vector_store %arg12[%c64, %c0_125], %93 {strides = array<i32>} : memref<144x384xf32, #tpu.memory_space<vmem>>, vector<16x384xf32>,
    %c0_126 = arith.constant 0 : index
    %c129_127 = arith.constant 129 : index
    %95 = vector.load %arg11[%c0_126, %c129_127] : memref<16x640xf32, #tpu.memory_space<vmem>>, vector<16x384xf32>
    %c80 = arith.constant 80 : index
    %c0_128 = arith.constant 0 : index
    %96 = vector.load %arg12[%c80, %c0_128] : memref<144x384xf32, #tpu.memory_space<vmem>>, vector<16x384xf32>
    tpu.vector_store %arg12[%c80, %c0_128], %95 {strides = array<i32>} : memref<144x384xf32, #tpu.memory_space<vmem>>, vector<16x384xf32>,
    %c0_129 = arith.constant 0 : index
    %c145_130 = arith.constant 145 : index
    %97 = vector.load %arg11[%c0_129, %c145_130] : memref<16x640xf32, #tpu.memory_space<vmem>>, vector<16x384xf32>
    %c96 = arith.constant 96 : index
    %c0_131 = arith.constant 0 : index
    %98 = vector.load %arg12[%c96, %c0_131] : memref<144x384xf32, #tpu.memory_space<vmem>>, vector<16x384xf32>
    tpu.vector_store %arg12[%c96, %c0_131], %97 {strides = array<i32>} : memref<144x384xf32, #tpu.memory_space<vmem>>, vector<16x384xf32>,
    %c0_132 = arith.constant 0 : index
    %c146_133 = arith.constant 146 : index
    %99 = vector.load %arg11[%c0_132, %c146_133] : memref<16x640xf32, #tpu.memory_space<vmem>>, vector<16x384xf32>
    %c112 = arith.constant 112 : index
    %c0_134 = arith.constant 0 : index
    %100 = vector.load %arg12[%c112, %c0_134] : memref<144x384xf32, #tpu.memory_space<vmem>>, vector<16x384xf32>
    tpu.vector_store %arg12[%c112, %c0_134], %99 {strides = array<i32>} : memref<144x384xf32, #tpu.memory_space<vmem>>, vector<16x384xf32>,
    %c0_135 = arith.constant 0 : index
    %c147_136 = arith.constant 147 : index
    %101 = vector.load %arg11[%c0_135, %c147_136] : memref<16x640xf32, #tpu.memory_space<vmem>>, vector<16x384xf32>
    %c128_137 = arith.constant 128 : index
    %c0_138 = arith.constant 0 : index
    %102 = vector.load %arg12[%c128_137, %c0_138] : memref<144x384xf32, #tpu.memory_space<vmem>>, vector<16x384xf32>
    tpu.vector_store %arg12[%c128_137, %c0_138], %101 {strides = array<i32>} : memref<144x384xf32, #tpu.memory_space<vmem>>, vector<16x384xf32>,
    %c0_139 = arith.constant 0 : index
    %c0_140 = arith.constant 0 : index
    %103 = vector.load %arg5[%c0_139, %c0_140] : memref<16x144xf32, #tpu.memory_space<vmem>>, vector<16x144xf32>
    %c0_141 = arith.constant 0 : index
    %c0_142 = arith.constant 0 : index
    %104 = vector.load %arg12[%c0_141, %c0_142] : memref<144x384xf32, #tpu.memory_space<vmem>>, vector<144x384xf32>
    %cst_143 = arith.constant dense<0.000000e+00> : vector<16x384xf32>
    %105 = tpu.matmul %103, %104, %cst_143 {dimension_numbers = #tpu.dot_dimension_numbers<[1], [0], [0], [1], [0, 0, 1, 1], [], []>} : vector<16x144xf32>, vector<144x384xf32>, vector<16x384xf32> -> vector<16x384xf32>
    %c0_144 = arith.constant 0 : index
    %c0_145 = arith.constant 0 : index
    %106 = vector.load %arg6[%c0_144, %c0_145] : memref<16x1xf32, #tpu.memory_space<vmem>>, vector<16x1xf32>
    %107 = vector.broadcast %106 : vector<16x1xf32> to vector<16x384xf32>
    %108 = arith.addf %105, %107 : vector<16x384xf32>
    %cst_146 = arith.constant 0.000000e+00 : f32
    %109 = vector.broadcast %cst_146 : f32 to vector<16x384xf32>
    %110 = arith.cmpf oge, %108, %109 : vector<16x384xf32>
    %cst_147 = arith.constant 0.00999999977 : f32
    %111 = vector.broadcast %cst_147 : f32 to vector<16x384xf32>
    %112 = arith.mulf %111, %108 : vector<16x384xf32>
    %113 = arith.select %110, %108, %112 : vector<16x384xi1>, vector<16x384xf32>
    %114 = vector.broadcast %0 : vector<1x384xf32> to vector<16x384xf32>
    %115 = arith.mulf %113, %114 : vector<16x384xf32>
    %c0_148 = arith.constant 0 : index
    %c128_149 = arith.constant 128 : index
    %116 = vector.load %arg10[%c0_148, %c128_149] : memref<16x640xf32, #tpu.memory_space<vmem>>, vector<16x384xf32>
    tpu.vector_store %arg10[%c0_148, %c128_149], %115 {strides = array<i32>} : memref<16x640xf32, #tpu.memory_space<vmem>>, vector<16x384xf32>,
    %c0_150 = arith.constant 0 : index
    %c109_151 = arith.constant 109 : index
    %117 = vector.load %arg10[%c0_150, %c109_151] : memref<16x640xf32, #tpu.memory_space<vmem>>, vector<16x384xf32>
    %c0_152 = arith.constant 0 : index
    %c0_153 = arith.constant 0 : index
    %118 = vector.load %arg12[%c0_152, %c0_153] : memref<144x384xf32, #tpu.memory_space<vmem>>, vector<16x384xf32>
    tpu.vector_store %arg12[%c0_152, %c0_153], %117 {strides = array<i32>} : memref<144x384xf32, #tpu.memory_space<vmem>>, vector<16x384xf32>,
    %c0_154 = arith.constant 0 : index
    %c110_155 = arith.constant 110 : index
    %119 = vector.load %arg10[%c0_154, %c110_155] : memref<16x640xf32, #tpu.memory_space<vmem>>, vector<16x384xf32>
    %c16_156 = arith.constant 16 : index
    %c0_157 = arith.constant 0 : index
    %120 = vector.load %arg12[%c16_156, %c0_157] : memref<144x384xf32, #tpu.memory_space<vmem>>, vector<16x384xf32>
    tpu.vector_store %arg12[%c16_156, %c0_157], %119 {strides = array<i32>} : memref<144x384xf32, #tpu.memory_space<vmem>>, vector<16x384xf32>,
    %c0_158 = arith.constant 0 : index
    %c111_159 = arith.constant 111 : index
    %121 = vector.load %arg10[%c0_158, %c111_159] : memref<16x640xf32, #tpu.memory_space<vmem>>, vector<16x384xf32>
    %c32_160 = arith.constant 32 : index
    %c0_161 = arith.constant 0 : index
    %122 = vector.load %arg12[%c32_160, %c0_161] : memref<144x384xf32, #tpu.memory_space<vmem>>, vector<16x384xf32>
    tpu.vector_store %arg12[%c32_160, %c0_161], %121 {strides = array<i32>} : memref<144x384xf32, #tpu.memory_space<vmem>>, vector<16x384xf32>,
    %c0_162 = arith.constant 0 : index
    %c127_163 = arith.constant 127 : index
    %123 = vector.load %arg10[%c0_162, %c127_163] : memref<16x640xf32, #tpu.memory_space<vmem>>, vector<16x384xf32>
    %c48_164 = arith.constant 48 : index
    %c0_165 = arith.constant 0 : index
    %124 = vector.load %arg12[%c48_164, %c0_165] : memref<144x384xf32, #tpu.memory_space<vmem>>, vector<16x384xf32>
    tpu.vector_store %arg12[%c48_164, %c0_165], %123 {strides = array<i32>} : memref<144x384xf32, #tpu.memory_space<vmem>>, vector<16x384xf32>,
    %c0_166 = arith.constant 0 : index
    %c128_167 = arith.constant 128 : index
    %125 = vector.load %arg10[%c0_166, %c128_167] : memref<16x640xf32, #tpu.memory_space<vmem>>, vector<16x384xf32>
    %c64_168 = arith.constant 64 : index
    %c0_169 = arith.constant 0 : index
    %126 = vector.load %arg12[%c64_168, %c0_169] : memref<144x384xf32, #tpu.memory_space<vmem>>, vector<16x384xf32>
    tpu.vector_store %arg12[%c64_168, %c0_169], %125 {strides = array<i32>} : memref<144x384xf32, #tpu.memory_space<vmem>>, vector<16x384xf32>,
    %c0_170 = arith.constant 0 : index
    %c129_171 = arith.constant 129 : index
    %127 = vector.load %arg10[%c0_170, %c129_171] : memref<16x640xf32, #tpu.memory_space<vmem>>, vector<16x384xf32>
    %c80_172 = arith.constant 80 : index
    %c0_173 = arith.constant 0 : index
    %128 = vector.load %arg12[%c80_172, %c0_173] : memref<144x384xf32, #tpu.memory_space<vmem>>, vector<16x384xf32>
    tpu.vector_store %arg12[%c80_172, %c0_173], %127 {strides = array<i32>} : memref<144x384xf32, #tpu.memory_space<vmem>>, vector<16x384xf32>,
    %c0_174 = arith.constant 0 : index
    %c145_175 = arith.constant 145 : index
    %129 = vector.load %arg10[%c0_174, %c145_175] : memref<16x640xf32, #tpu.memory_space<vmem>>, vector<16x384xf32>
    %c96_176 = arith.constant 96 : index
    %c0_177 = arith.constant 0 : index
    %130 = vector.load %arg12[%c96_176, %c0_177] : memref<144x384xf32, #tpu.memory_space<vmem>>, vector<16x384xf32>
    tpu.vector_store %arg12[%c96_176, %c0_177], %129 {strides = array<i32>} : memref<144x384xf32, #tpu.memory_space<vmem>>, vector<16x384xf32>,
    %c0_178 = arith.constant 0 : index
    %c146_179 = arith.constant 146 : index
    %131 = vector.load %arg10[%c0_178, %c146_179] : memref<16x640xf32, #tpu.memory_space<vmem>>, vector<16x384xf32>
    %c112_180 = arith.constant 112 : index
    %c0_181 = arith.constant 0 : index
    %132 = vector.load %arg12[%c112_180, %c0_181] : memref<144x384xf32, #tpu.memory_space<vmem>>, vector<16x384xf32>
    tpu.vector_store %arg12[%c112_180, %c0_181], %131 {strides = array<i32>} : memref<144x384xf32, #tpu.memory_space<vmem>>, vector<16x384xf32>,
    %c0_182 = arith.constant 0 : index
    %c147_183 = arith.constant 147 : index
    %133 = vector.load %arg10[%c0_182, %c147_183] : memref<16x640xf32, #tpu.memory_space<vmem>>, vector<16x384xf32>
    %c128_184 = arith.constant 128 : index
    %c0_185 = arith.constant 0 : index
    %134 = vector.load %arg12[%c128_184, %c0_185] : memref<144x384xf32, #tpu.memory_space<vmem>>, vector<16x384xf32>
    tpu.vector_store %arg12[%c128_184, %c0_185], %133 {strides = array<i32>} : memref<144x384xf32, #tpu.memory_space<vmem>>, vector<16x384xf32>,
    %c0_186 = arith.constant 0 : index
    %c0_187 = arith.constant 0 : index
    %135 = vector.load %arg7[%c0_186, %c0_187] : memref<2x144xf32, #tpu.memory_space<vmem>>, vector<2x144xf32>
    %c0_188 = arith.constant 0 : index
    %c0_189 = arith.constant 0 : index
    %136 = vector.load %arg12[%c0_188, %c0_189] : memref<144x384xf32, #tpu.memory_space<vmem>>, vector<144x384xf32>
    %cst_190 = arith.constant dense<0.000000e+00> : vector<2x384xf32>
    %137 = tpu.matmul %135, %136, %cst_190 {dimension_numbers = #tpu.dot_dimension_numbers<[1], [0], [0], [1], [0, 0, 1, 1], [], []>} : vector<2x144xf32>, vector<144x384xf32>, vector<2x384xf32> -> vector<2x384xf32>
    %c0_191 = arith.constant 0 : index
    %c0_192 = arith.constant 0 : index
    %138 = vector.load %arg8[%c0_191, %c0_192] : memref<2x1xf32, #tpu.memory_space<vmem>>, vector<2x1xf32>
    %139 = vector.broadcast %138 : vector<2x1xf32> to vector<2x384xf32>
    %140 = arith.addf %137, %139 : vector<2x384xf32>
    %141 = vector.broadcast %0 : vector<1x384xf32> to vector<2x384xf32>
    %142 = arith.mulf %140, %141 : vector<2x384xf32>
    %c0_193 = arith.constant 0 : index
    %c0_194 = arith.constant 0 : index
    %c0_195 = arith.constant 0 : index
    %143 = vector.load %arg9[%c0_193, %c0_194, %c0_195] : memref<1x2x384xf32, #tpu.memory_space<vmem>>, vector<1x2x384xf32>
    %144 = vector.shape_cast %143 : vector<1x2x384xf32> to vector<2x384xf32>
    %145 = vector.shape_cast %142 : vector<2x384xf32> to vector<1x2x384xf32>
    tpu.vector_store %arg9[%c0_193, %c0_194, %c0_195], %145 {strides = array<i32>} : memref<1x2x384xf32, #tpu.memory_space<vmem>>, vector<1x2x384xf32>,
    return
  }
  func.func @transform_0(%arg0: i32) -> (i32, i32, i32, i32) {
    %c0_i32 = arith.constant 0 : i32
    %c0_i32_0 = arith.constant 0 : i32
    %c0_i32_1 = arith.constant 0 : i32
    %c0_i32_2 = arith.constant 0 : i32
    return %arg0, %c0_i32, %c0_i32_0, %c0_i32_1 : i32, i32, i32, i32
  }
  func.func @transform_1(%arg0: i32) -> (i32, i32) {
    %c0_i32 = arith.constant 0 : i32
    %c0_i32_0 = arith.constant 0 : i32
    %c0_i32_1 = arith.constant 0 : i32
    return %c0_i32, %c0_i32_0 : i32, i32
  }
  func.func @transform_2(%arg0: i32) -> (i32, i32) {
    %c0_i32 = arith.constant 0 : i32
    %c0_i32_0 = arith.constant 0 : i32
    %c0_i32_1 = arith.constant 0 : i32
    return %c0_i32, %c0_i32_0 : i32, i32
  }
  func.func @transform_3(%arg0: i32) -> (i32, i32) {
    %c0_i32 = arith.constant 0 : i32
    %c0_i32_0 = arith.constant 0 : i32
    %c0_i32_1 = arith.constant 0 : i32
    return %c0_i32, %c0_i32_0 : i32, i32
  }
  func.func @transform_4(%arg0: i32) -> (i32, i32) {
    %c0_i32 = arith.constant 0 : i32
    %c0_i32_0 = arith.constant 0 : i32
    %c0_i32_1 = arith.constant 0 : i32
    return %c0_i32, %c0_i32_0 : i32, i32
  }
  func.func @transform_5(%arg0: i32) -> (i32, i32) {
    %c0_i32 = arith.constant 0 : i32
    %c0_i32_0 = arith.constant 0 : i32
    %c0_i32_1 = arith.constant 0 : i32
    return %c0_i32, %c0_i32_0 : i32, i32
  }
  func.func @transform_6(%arg0: i32) -> (i32, i32) {
    %c0_i32 = arith.constant 0 : i32
    %c0_i32_0 = arith.constant 0 : i32
    %c0_i32_1 = arith.constant 0 : i32
    return %c0_i32, %c0_i32_0 : i32, i32
  }
  func.func @transform_7(%arg0: i32) -> (i32, i32) {
    %c0_i32 = arith.constant 0 : i32
    %c0_i32_0 = arith.constant 0 : i32
    %c0_i32_1 = arith.constant 0 : i32
    return %c0_i32, %c0_i32_0 : i32, i32
  }
  func.func @transform_8(%arg0: i32) -> (i32, i32, i32) {
    %c0_i32 = arith.constant 0 : i32
    %c0_i32_0 = arith.constant 0 : i32
    %c0_i32_1 = arith.constant 0 : i32
    return %arg0, %c0_i32, %c0_i32_0 : i32, i32, i32
  }
}

</mosaic_0001>

<llo_original>
// kernel: conv_block_forward.1
$region0: #{conv_block_forward.1}
  #allocation0 [shape = 'u32[]', space=smem, size = 0x4, offset = 0x4, fixed_abs, tag = 'smem constant byte address 0x4 - core index']
  #allocation1 [shape = 'u32[144,128]{1,0:T(1,128)}', space=vmem, size = 0x12000, scoped, tag = 'internal scratch']
  #allocation2 [shape = 'f32[16,640]{1,0:T(8,128)}', space=vmem, size = 0xa000, scoped, tag = 'scratch operand']
  #allocation3 [shape = 'f32[16,640]{1,0:T(8,128)}', space=vmem, size = 0xa000, scoped, tag = 'scratch operand']
  #allocation4 [shape = 'f32[144,384]{1,0:T(8,128)}', space=vmem, size = 0x36000, scoped, tag = 'scratch operand']
  %s0 = inlined_call_operand.vmem [shape: f32[2,2,16,16], index: 0, kind: input, shape index: {}]
  %s1 = inlined_call_operand.vmem [shape: f32[1,384], index: 1, kind: input, shape index: {}]
  %s2 = inlined_call_operand.vmem [shape: f32[16,18], index: 2, kind: input, shape index: {}]
  %s3 = inlined_call_operand.vmem [shape: f32[16,1], index: 3, kind: input, shape index: {}]
  %s4 = inlined_call_operand.vmem [shape: f32[16,144], index: 4, kind: input, shape index: {}]
  %s5 = inlined_call_operand.vmem [shape: f32[16,1], index: 5, kind: input, shape index: {}]
  %s6 = inlined_call_operand.vmem [shape: f32[2,144], index: 6, kind: input, shape index: {}]
  %s7 = inlined_call_operand.vmem [shape: f32[2,1], index: 7, kind: input, shape index: {}]
  %s8 = inlined_call_operand.vmem [shape: f32[2,2,384], index: 8, kind: output, shape index: {}]
  %s9 = sld [smem:[#allocation0]]
  $region65: #{conv_block_forward.1} parent=0
    _
  %s11 = ssub.s32 1, %s9
  %s12 = scalar_select 0, %s11, %s9
  loop: start=0, step=1, limit=4
  $region2: #{conv_block_forward.1} parent=0 // loop_pre_header
    _
  $region3: #{conv_block_forward.1} parent=0 // loop_header
    %s14 = sphi 0, %s18
    %p15 = scmp.ge.s32.totalorder %s14, 4
    %s24 = sphi 0, %s26
    %s27 = sphi 0, %s24
    %s28 = sphi 0, %s27
    %s44 = sphi 0, %s28
    %s48 = sphi 0, %s48
    %s50 = sphi 0, %s48
    %s51 = sphi 0, %s50
    %s65 = sphi 0, %s51
    %s69 = sphi 0, %s69
    %s71 = sphi 0, %s69
    %s72 = sphi 0, %s71
    %s86 = sphi 0, %s72
    %s90 = sphi 0, %s90
    %s92 = sphi 0, %s90
    %s93 = sphi 0, %s92
    %s107 = sphi 0, %s93
    %s111 = sphi 0, %s111
    %s113 = sphi 0, %s111
    %s114 = sphi 0, %s113
    %s128 = sphi 0, %s114
    %s132 = sphi 0, %s132
    %s134 = sphi 0, %s132
    %s135 = sphi 0, %s134
    %s149 = sphi 0, %s135
    %s153 = sphi 0, %s153
    %s155 = sphi 0, %s153
    %s156 = sphi 0, %s155
    %s170 = sphi 0, %s156
    %s174 = sphi 0, %s174
    %s176 = sphi 0, %s174
    %s177 = sphi 0, %s176
    %s191 = sphi 0, %s177
    %s197 = sphi 0, %s199
    %s200 = sphi 0, %s197
    %s201 = sphi 0, %s200
    %s217 = sphi 0, %s201
  $region4: #{conv_block_forward.1} parent=0 // loop_header_branch
    %17 = sbr.rel (%p15) target = $region8
  $region5: #{conv_block_forward.1} parent=0 // loop_body
    %s19 = ssub.s32 %s14, 1
    %s20 = ssub.s32 %s14, 2
    %s21 = sadd.s32 %s14, 1
    %s22 = ssub.s32 %s14, %s21
    %p23 = scmp.eq.s32.totalorder %s22, 0
    %s25 = sadd.s32 %s24, 1
    %s26 = scalar_select %p23, %s24, %s25
    %p29 = pneg %p23
    %p30 = scmp.eq.s32.totalorder %s14, 1
    %p31 = por %p29, %p30
    %p32 = scmp.ne.s32.totalorder %s24, %s27
    %p33 = scmp.eq.s32.totalorder %s14, 0
    %p34 = por %p32, %p33
    %p35 = scmp.ne.s32.totalorder %s24, %s27
    %p36 = scmp.eq.s32.totalorder %s19, 1
    %p37 = por %p35, %p36
    %p38 = scmp.ne.s32.totalorder %s27, %s28
    %p39 = scmp.eq.s32.totalorder %s19, 0
    %p40 = por %p38, %p39
    %p41 = scmp.ne.s32.totalorder %s27, %s28
    %p42 = scmp.eq.s32.totalorder %s20, 1
    %p43 = por %p41, %p42
    %p45 = scmp.ne.s32.totalorder %s28, %s44
    %p46 = scmp.eq.s32.totalorder %s20, 0
    %p47 = por %p45, %p46
    %s49 = sadd.s32 %s48, 1
    %p52 = scmp.eq.s32.totalorder %s14, 1
    %p53 = scmp.ne.s32.totalorder %s48, %s50
    %p54 = scmp.eq.s32.totalorder %s14, 0
    %p55 = por %p53, %p54
    %p56 = scmp.ne.s32.totalorder %s48, %s50
    %p57 = scmp.eq.s32.totalorder %s19, 1
    %p58 = por %p56, %p57
    %p59 = scmp.ne.s32.totalorder %s50, %s51
    %p60 = scmp.eq.s32.totalorder %s19, 0
    %p61 = por %p59, %p60
    %p62 = scmp.ne.s32.totalorder %s50, %s51
    %p63 = scmp.eq.s32.totalorder %s20, 1
    %p64 = por %p62, %p63
    %p66 = scmp.ne.s32.totalorder %s51, %s65
    %p67 = scmp.eq.s32.totalorder %s20, 0
    %p68 = por %p66, %p67
    %s70 = sadd.s32 %s69, 1
    %p73 = scmp.eq.s32.totalorder %s14, 1
    %p74 = scmp.ne.s32.totalorder %s69, %s71
    %p75 = scmp.eq.s32.totalorder %s14, 0
    %p76 = por %p74, %p75
    %p77 = scmp.ne.s32.totalorder %s69, %s71
    %p78 = scmp.eq.s32.totalorder %s19, 1
    %p79 = por %p77, %p78
    %p80 = scmp.ne.s32.totalorder %s71, %s72
    %p81 = scmp.eq.s32.totalorder %s19, 0
    %p82 = por %p80, %p81
    %p83 = scmp.ne.s32.totalorder %s71, %s72
    %p84 = scmp.eq.s32.totalorder %s20, 1
    %p85 = por %p83, %p84
    %p87 = scmp.ne.s32.totalorder %s72, %s86
    %p88 = scmp.eq.s32.totalorder %s20, 0
    %p89 = por %p87, %p88
    %s91 = sadd.s32 %s90, 1
    %p94 = scmp.eq.s32.totalorder %s14, 1
    %p95 = scmp.ne.s32.totalorder %s90, %s92
    %p96 = scmp.eq.s32.totalorder %s14, 0
    %p97 = por %p95, %p96
    %p98 = scmp.ne.s32.totalorder %s90, %s92
    %p99 = scmp.eq.s32.totalorder %s19, 1
    %p100 = por %p98, %p99
    %p101 = scmp.ne.s32.totalorder %s92, %s93
    %p102 = scmp.eq.s32.totalorder %s19, 0
    %p103 = por %p101, %p102
    %p104 = scmp.ne.s32.totalorder %s92, %s93
    %p105 = scmp.eq.s32.totalorder %s20, 1
    %p106 = por %p104, %p105
    %p108 = scmp.ne.s32.totalorder %s93, %s107
    %p109 = scmp.eq.s32.totalorder %s20, 0
    %p110 = por %p108, %p109
    %s112 = sadd.s32 %s111, 1
    %p115 = scmp.eq.s32.totalorder %s14, 1
    %p116 = scmp.ne.s32.totalorder %s111, %s113
    %p117 = scmp.eq.s32.totalorder %s14, 0
    %p118 = por %p116, %p117
    %p119 = scmp.ne.s32.totalorder %s111, %s113
    %p120 = scmp.eq.s32.totalorder %s19, 1
    %p121 = por %p119, %p120
    %p122 = scmp.ne.s32.totalorder %s113, %s114
    %p123 = scmp.eq.s32.totalorder %s19, 0
    %p124 = por %p122, %p123
    %p125 = scmp.ne.s32.totalorder %s113, %s114
    %p126 = scmp.eq.s32.totalorder %s20, 1
    %p127 = por %p125, %p126
    %p129 = scmp.ne.s32.totalorder %s114, %s128
    %p130 = scmp.eq.s32.totalorder %s20, 0
    %p131 = por %p129, %p130
    %s133 = sadd.s32 %s132, 1
    %p136 = scmp.eq.s32.totalorder %s14, 1
    %p137 = scmp.ne.s32.totalorder %s132, %s134
    %p138 = scmp.eq.s32.totalorder %s14, 0
    %p139 = por %p137, %p138
    %p140 = scmp.ne.s32.totalorder %s132, %s134
    %p141 = scmp.eq.s32.totalorder %s19, 1
    %p142 = por %p140, %p141
    %p143 = scmp.ne.s32.totalorder %s134, %s135
    %p144 = scmp.eq.s32.totalorder %s19, 0
    %p145 = por %p143, %p144
    %p146 = scmp.ne.s32.totalorder %s134, %s135
    %p147 = scmp.eq.s32.totalorder %s20, 1
    %p148 = por %p146, %p147
    %p150 = scmp.ne.s32.totalorder %s135, %s149
    %p151 = scmp.eq.s32.totalorder %s20, 0
    %p152 = por %p150, %p151
    %s154 = sadd.s32 %s153, 1
    %p157 = scmp.eq.s32.totalorder %s14, 1
    %p158 = scmp.ne.s32.totalorder %s153, %s155
    %p159 = scmp.eq.s32.totalorder %s14, 0
    %p160 = por %p158, %p159
    %p161 = scmp.ne.s32.totalorder %s153, %s155
    %p162 = scmp.eq.s32.totalorder %s19, 1
    %p163 = por %p161, %p162
    %p164 = scmp.ne.s32.totalorder %s155, %s156
    %p165 = scmp.eq.s32.totalorder %s19, 0
    %p166 = por %p164, %p165
    %p167 = scmp.ne.s32.totalorder %s155, %s156
    %p168 = scmp.eq.s32.totalorder %s20, 1
    %p169 = por %p167, %p168
    %p171 = scmp.ne.s32.totalorder %s156, %s170
    %p172 = scmp.eq.s32.totalorder %s20, 0
    %p173 = por %p171, %p172
    %s175 = sadd.s32 %s174, 1
    %p178 = scmp.eq.s32.totalorder %s14, 1
    %p179 = scmp.ne.s32.totalorder %s174, %s176
    %p180 = scmp.eq.s32.totalorder %s14, 0
    %p181 = por %p179, %p180
    %p182 = scmp.ne.s32.totalorder %s174, %s176
    %p183 = scmp.eq.s32.totalorder %s19, 1
    %p184 = por %p182, %p183
    %p185 = scmp.ne.s32.totalorder %s176, %s177
    %p186 = scmp.eq.s32.totalorder %s19, 0
    %p187 = por %p185, %p186
    %p188 = scmp.ne.s32.totalorder %s176, %s177
    %p189 = scmp.eq.s32.totalorder %s20, 1
    %p190 = por %p188, %p189
    %p192 = scmp.ne.s32.totalorder %s177, %s191
    %p193 = scmp.eq.s32.totalorder %s20, 0
    %p194 = por %p192, %p193
    %s195 = ssub.s32 %s14, %s21
    %p196 = scmp.eq.s32.totalorder %s195, 0
    %s198 = sadd.s32 %s197, 1
    %s199 = scalar_select %p196, %s197, %s198
    %p202 = pneg %p196
    %p203 = scmp.eq.s32.totalorder %s14, 1
    %p204 = por %p202, %p203
    %p205 = scmp.ne.s32.totalorder %s197, %s200
    %p206 = scmp.eq.s32.totalorder %s14, 0
    %p207 = por %p205, %p206
    %p208 = scmp.ne.s32.totalorder %s197, %s200
    %p209 = scmp.eq.s32.totalorder %s19, 1
    %p210 = por %p208, %p209
    %p211 = scmp.ne.s32.totalorder %s200, %s201
    %p212 = scmp.eq.s32.totalorder %s19, 0
    %p213 = por %p211, %p212
    %p214 = scmp.ne.s32.totalorder %s200, %s201
    %p215 = scmp.eq.s32.totalorder %s20, 1
    %p216 = por %p214, %p215
    %p218 = scmp.ne.s32.totalorder %s201, %s217
    %p219 = scmp.eq.s32.totalorder %s20, 0
    %p220 = por %p218, %p219
    %p221 = scmp.le.s32.totalorder 1, %s14
    %p222 = scmp.lt.s32.totalorder %s14, 3
    %p223 = pnand %p221, %p222
    %p224 = pneg %p223
    // Predicated region
    $region9: #{conv_block_forward.1} parent=5 // pred_check
      _
    $region10: #{conv_block_forward.1} parent=5 // pred_check_branch
      %226 = sbr.rel (%p223) target = $region12
    $region11: #{conv_block_forward.1} parent=5 // pred_region
      %s227 = ssub.s32 %s14, 1
      // Predicated region
      $region13: #{conv_block_forward.1} parent=11 // pred_check
        %p228 = pneg %p61
      $region14: #{conv_block_forward.1} parent=11 // pred_check_branch
        %230 = sbr.rel (%p228) target = $region16
      $region15: #{conv_block_forward.1} parent=11 // pred_region
        _
      $region16: #{conv_block_forward.1} parent=11 // pred_fallthru
        _
      // Predicated region
      $region17: #{conv_block_forward.1} parent=11 // pred_check
        %p231 = pneg %p82
      $region18: #{conv_block_forward.1} parent=11 // pred_check_branch
        %233 = sbr.rel (%p231) target = $region20
      $region19: #{conv_block_forward.1} parent=11 // pred_region
        _
      $region20: #{conv_block_forward.1} parent=11 // pred_fallthru
        _
      // Predicated region
      $region21: #{conv_block_forward.1} parent=11 // pred_check
        %p234 = pneg %p103
      $region22: #{conv_block_forward.1} parent=11 // pred_check_branch
        %236 = sbr.rel (%p234) target = $region24
      $region23: #{conv_block_forward.1} parent=11 // pred_region
        _
      $region24: #{conv_block_forward.1} parent=11 // pred_fallthru
        _
      // Predicated region
      $region25: #{conv_block_forward.1} parent=11 // pred_check
        %p237 = pneg %p124
      $region26: #{conv_block_forward.1} parent=11 // pred_check_branch
        %239 = sbr.rel (%p237) target = $region28
      $region27: #{conv_block_forward.1} parent=11 // pred_region
        _
      $region28: #{conv_block_forward.1} parent=11 // pred_fallthru
        _
      // Predicated region
      $region29: #{conv_block_forward.1} parent=11 // pred_check
        %p240 = pneg %p145
      $region30: #{conv_block_forward.1} parent=11 // pred_check_branch
        %242 = sbr.rel (%p240) target = $region32
      $region31: #{conv_block_forward.1} parent=11 // pred_region
        _
      $region32: #{conv_block_forward.1} parent=11 // pred_fallthru
        _
      // Predicated region
      $region33: #{conv_block_forward.1} parent=11 // pred_check
        %p243 = pneg %p166
      $region34: #{conv_block_forward.1} parent=11 // pred_check_branch
        %245 = sbr.rel (%p243) target = $region36
      $region35: #{conv_block_forward.1} parent=11 // pred_region
        _
      $region36: #{conv_block_forward.1} parent=11 // pred_fallthru
        _
      // Predicated region
      $region37: #{conv_block_forward.1} parent=11 // pred_check
        %p246 = pneg %p187
      $region38: #{conv_block_forward.1} parent=11 // pred_check_branch
        %248 = sbr.rel (%p246) target = $region40
      $region39: #{conv_block_forward.1} parent=11 // pred_region
        _
      $region40: #{conv_block_forward.1} parent=11 // pred_fallthru
        _
    $region12: #{conv_block_forward.1} parent=5 // pred_fallthru
      _
    %p249 = scmp.lt.s32.totalorder %s14, 2
    // Predicated region
    $region41: #{conv_block_forward.1} parent=5 // pred_check
      %p250 = pneg %p249
    $region42: #{conv_block_forward.1} parent=5 // pred_check_branch
      %252 = sbr.rel (%p250) target = $region44
    $region43: #{conv_block_forward.1} parent=5 // pred_region
      // Predicated region
      $region45: #{conv_block_forward.1} parent=43 // pred_check
        %p253 = pneg %p34
      $region46: #{conv_block_forward.1} parent=43 // pred_check_branch
        %255 = sbr.rel (%p253) target = $region48
      $region47: #{conv_block_forward.1} parent=43 // pred_region
        %p256 = scmp.lt.s32.totalorder %s14, 1
        %s257 = scalar_select %p256, %s14, 1
        %s258 = smul.addr %s257, 4
        %s259 = smul.addr %s258, 8
        %s260 = scalar_lea.vmem %s0, %s259
      $region48: #{conv_block_forward.1} parent=43 // pred_fallthru
        _
    $region44: #{conv_block_forward.1} parent=5 // pred_fallthru
      _
    %p261 = scmp.le.s32.totalorder 1, %s14
    %p262 = scmp.lt.s32.totalorder %s14, 3
    %p263 = pnand %p261, %p262
    %p264 = pneg %p263
    // Predicated region
    $region49: #{conv_block_forward.1} parent=5 // pred_check
      _
    $region50: #{conv_block_forward.1} parent=5 // pred_check_branch
      %266 = sbr.rel (%p263) target = $region52
    $region51: #{conv_block_forward.1} parent=5 // pred_region
      %s267 = ssub.s32 %s14, 1
      %p268 = scmp.lt.s32.totalorder %s19, 1
      %s269 = scalar_select %p268, %s19, 1
      %s270 = smul.addr %s269, 4
      %s271 = smul.addr %s270, 8
      %s272 = scalar_lea.vmem %s0, %s271
      %p273 = pneg %p40
      %p274 = pneg %p37
      %p275 = pneg %p61
      %p276 = pneg %p58
      %p277 = pneg %p82
      %p278 = pneg %p79
      %p279 = pneg %p103
      %p280 = pneg %p100
      %p281 = pneg %p124
      %p282 = pneg %p121
      %p283 = pneg %p145
      %p284 = pneg %p142
      %p285 = pneg %p166
      %p286 = pneg %p163
      %p287 = pneg %p187
      %p288 = pneg %p184
      %p289 = pneg %p213
      %p290 = pneg %p210
      %p291 = scmp.lt.s32.totalorder %s19, 1
      %s292 = scalar_select %p291, %s19, 1
      %s293 = smul.addr %s292, 3
      %s294 = smul.addr %s293, 2
      %s295 = scalar_lea.vmem %s8, %s294
      %p296 = scmp.lt.s32.totalorder %s19, 1
      %s297 = scalar_select %p296, %s19, 1
      %s298 = smul.addr %s297, 4
      %s299 = smul.addr %s298, 8
      %s300 = scalar_lea.vmem %s0, %s299
      %p301 = scmp.lt.s32.totalorder %s19, 1
      %s302 = scalar_select %p301, %s19, 1
      %s303 = smul.addr %s302, 3
      %s304 = smul.addr %s303, 2
      %s305 = scalar_lea.vmem %s8, %s304
      %v306 = vld [vmem:[%s1] sm:$0x7]
      %307 = vst [vmem:[#allocation2] sm:$0xff] 0.0
      %308 = vst [vmem:[#allocation2 + $0x8] sm:$0xff] 0.0
      %309 = vst [vmem:[#allocation2 + $0x10] sm:$0xff] 0.0
      %310 = vst [vmem:[#allocation2 + $0x18] sm:$0xff] 0.0
      %311 = vst [vmem:[#allocation2 + $0x20] sm:$0xff] 0.0
      %312 = vst [vmem:[#allocation2 + $0x28] sm:$0xff] 0.0
      %313 = vst [vmem:[#allocation2 + $0x30] sm:$0xff] 0.0
      %314 = vst [vmem:[#allocation2 + $0x38] sm:$0xff] 0.0
      %315 = vst [vmem:[#allocation2 + $0x40] sm:$0xff] 0.0
      %316 = vst [vmem:[#allocation2 + $0x48] sm:$0xff] 0.0
      %317 = vst [vmem:[#allocation3] sm:$0xff] 0.0
      %318 = vst [vmem:[#allocation3 + $0x8] sm:$0xff] 0.0
      %319 = vst [vmem:[#allocation3 + $0x10] sm:$0xff] 0.0
      %320 = vst [vmem:[#allocation3 + $0x18] sm:$0xff] 0.0
      %321 = vst [vmem:[#allocation3 + $0x20] sm:$0xff] 0.0
      %322 = vst [vmem:[#allocation3 + $0x28] sm:$0xff] 0.0
      %323 = vst [vmem:[#allocation3 + $0x30] sm:$0xff] 0.0
      %324 = vst [vmem:[#allocation3 + $0x38] sm:$0xff] 0.0
      %325 = vst [vmem:[#allocation3 + $0x40] sm:$0xff] 0.0
      %326 = vst [vmem:[#allocation3 + $0x48] sm:$0xff] 0.0
      %v327 = vld [vmem:[%s300] sm:$0x1]
      %v328 = vld [vmem:[%s300 + $0x10] sm:$0x1]
      %v331 = vrot.slane %v328, 7
      %vm332 = vcmask 1041409
      %v333 = vsel %vm332, %v331, %v327
      %334 = vrot.lane.b32.xlu0 %v333, 19
      %v335 = vpop.permute.xlu0 %334
      %vm337 = vcmask 279704
      %338 = vst.msk [vmem:[#allocation2 + $0x8] sm:$0x3] %vm337, %v335
      %v339 = vld [vmem:[%s300 + $0x1] sm:$0x1]
      %v340 = vld [vmem:[%s300 + $0x11] sm:$0x1]
      %v343 = vrot.slane %v340, 7
      %v344 = vsel %vm332, %v343, %v339
      %345 = vrot.lane.b32.xlu0 %v344, 37
      %v346 = vpop.permute.xlu0 %345
      %vm348 = vcmask 427304
      %349 = vst.msk [vmem:[#allocation2 + $0x8] sm:$0x3] %vm348, %v346
      %v350 = vld [vmem:[%s300 + $0x2] sm:$0x1]
      %v351 = vld [vmem:[%s300 + $0x12] sm:$0x1]
      %v354 = vrot.slane %v351, 7
      %v355 = vsel %vm332, %v354, %v350
      %356 = vrot.lane.b32.xlu0 %v355, 55
      %v357 = vpop.permute.xlu0 %356
      %vm359 = vcmask 574904
      %360 = vst.msk [vmem:[#allocation2 + $0x8] sm:$0x3] %vm359, %v357
      %v361 = vld [vmem:[%s300 + $0x3] sm:$0x1]
      %v362 = vld [vmem:[%s300 + $0x13] sm:$0x1]
      %v365 = vrot.slane %v362, 7
      %v366 = vsel %vm332, %v365, %v361
      %367 = vrot.lane.b32.xlu0 %v366, 73
      %v368 = vpop.permute.xlu0 %367
      %vm370 = vcmask 722504
      %371 = vst.msk [vmem:[#allocation2 + $0x8] sm:$0x3] %vm370, %v368
      %v372 = vld [vmem:[%s300 + $0x4] sm:$0x1]
      %v373 = vld [vmem:[%s300 + $0x14] sm:$0x1]
      %v376 = vrot.slane %v373, 7
      %v377 = vsel %vm332, %v376, %v372
      %378 = vrot.lane.b32.xlu0 %v377, 91
      %v379 = vpop.permute.xlu0 %378
      %vm381 = vcmask 870104
      %382 = vst.msk [vmem:[#allocation2 + $0x8] sm:$0x3] %vm381, %v379
      %v383 = vld [vmem:[%s300 + $0x5] sm:$0x1]
      %v384 = vld [vmem:[%s300 + $0x15] sm:$0x1]
      %v387 = vrot.slane %v384, 7
      %v388 = vsel %vm332, %v387, %v383
      %389 = vrot.lane.b32.xlu0 %v388, 109
      %v390 = vpop.permute.xlu0 %389
      %vm392 = vcmask 1017704
      %393 = vst.msk [vmem:[#allocation2 + $0x8] sm:$0x3] %vm392, %v390
      %v394 = vld [vmem:[%s300 + $0x6] sm:$0x1]
      %v395 = vld [vmem:[%s300 + $0x16] sm:$0x1]
      %v398 = vrot.slane %v395, 7
      %v399 = vsel %vm332, %v398, %v394
      %400 = vrot.lane.b32.xlu0 %v399, 127
      %v401 = vpop.permute.xlu0 %400
      %vm403 = vcmask 1042424
      %404 = vst.msk [vmem:[#allocation2 + $0x8] sm:$0x3] %vm403, %v401
      %vm405 = vcmask 115712
      %406 = vst.msk [vmem:[#allocation2 + $0x10] sm:$0x3] %vm405, %v401
      %v407 = vld [vmem:[%s300 + $0x7] sm:$0x1]
      %v408 = vld [vmem:[%s300 + $0x17] sm:$0x1]
      %v411 = vrot.slane %v408, 7
      %v412 = vsel %vm332, %v411, %v407
      %413 = vrot.lane.b32.xlu0 %v412, 17
      %v414 = vpop.permute.xlu0 %413
      %vm416 = vcmask 263304
      %417 = vst.msk [vmem:[#allocation2 + $0x10] sm:$0x3] %vm416, %v414
      %v418 = vld [vmem:[%s300 + $0x8] sm:$0x1]
      %v419 = vld [vmem:[%s300 + $0x18] sm:$0x1]
      %v422 = vrot.slane %v419, 7
      %v423 = vsel %vm332, %v422, %v418
      %424 = vrot.lane.b32.xlu0 %v423, 35
      %v425 = vpop.permute.xlu0 %424
      %vm427 = vcmask 410904
      %428 = vst.msk [vmem:[#allocation2 + $0x10] sm:$0x3] %vm427, %v425
      %v429 = vld [vmem:[%s300 + $0x9] sm:$0x1]
      %v430 = vld [vmem:[%s300 + $0x19] sm:$0x1]
      %v433 = vrot.slane %v430, 7
      %v434 = vsel %vm332, %v433, %v429
      %435 = vrot.lane.b32.xlu0 %v434, 53
      %v436 = vpop.permute.xlu0 %435
      %vm438 = vcmask 558504
      %439 = vst.msk [vmem:[#allocation2 + $0x10] sm:$0x3] %vm438, %v436
      %v440 = vld [vmem:[%s300 + $0xa] sm:$0x1]
      %v441 = vld [vmem:[%s300 + $0x1a] sm:$0x1]
      %v444 = vrot.slane %v441, 7
      %v445 = vsel %vm332, %v444, %v440
      %446 = vrot.lane.b32.xlu0 %v445, 71
      %v447 = vpop.permute.xlu0 %446
      %vm449 = vcmask 706104
      %450 = vst.msk [vmem:[#allocation2 + $0x10] sm:$0x3] %vm449, %v447
      %v451 = vld [vmem:[%s300 + $0xb] sm:$0x1]
      %v452 = vld [vmem:[%s300 + $0x1b] sm:$0x1]
      %v455 = vrot.slane %v452, 7
      %v456 = vsel %vm332, %v455, %v451
      %457 = vrot.lane.b32.xlu0 %v456, 89
      %v458 = vpop.permute.xlu0 %457
      %vm460 = vcmask 853704
      %461 = vst.msk [vmem:[#allocation2 + $0x10] sm:$0x3] %vm460, %v458
      %v462 = vld [vmem:[%s300 + $0xc] sm:$0x1]
      %v463 = vld [vmem:[%s300 + $0x1c] sm:$0x1]
      %v466 = vrot.slane %v463, 7
      %v467 = vsel %vm332, %v466, %v462
      %468 = vrot.lane.b32.xlu0 %v467, 107
      %v469 = vpop.permute.xlu0 %468
      %vm471 = vcmask 1001304
      %472 = vst.msk [vmem:[#allocation2 + $0x10] sm:$0x3] %vm471, %v469
      %v473 = vld [vmem:[%s300 + $0xd] sm:$0x1]
      %v474 = vld [vmem:[%s300 + $0x1d] sm:$0x1]
      %v477 = vrot.slane %v474, 7
      %v478 = vsel %vm332, %v477, %v473
      %479 = vrot.lane.b32.xlu0 %v478, 125
      %v480 = vpop.permute.xlu0 %479
      %vm482 = vcmask 1042408
      %483 = vst.msk [vmem:[#allocation2 + $0x10] sm:$0x3] %vm482, %v480
      %vm484 = vcmask 99328
      %485 = vst.msk [vmem:[#allocation2 + $0x18] sm:$0x3] %vm484, %v480
      %v486 = vld [vmem:[%s300 + $0xe] sm:$0x1]
      %v487 = vld [vmem:[%s300 + $0x1e] sm:$0x1]
      %v490 = vrot.slane %v487, 7
      %v491 = vsel %vm332, %v490, %v486
      %492 = vrot.lane.b32.xlu0 %v491, 15
      %v493 = vpop.permute.xlu0 %492
      %vm495 = vcmask 246904
      %496 = vst.msk [vmem:[#allocation2 + $0x18] sm:$0x3] %vm495, %v493
      %v497 = vld [vmem:[%s300 + $0xf] sm:$0x1]
      %v498 = vld [vmem:[%s300 + $0x1f] sm:$0x1]
      %v501 = vrot.slane %v498, 7
      %v502 = vsel %vm332, %v501, %v497
      %503 = vrot.lane.b32.xlu0 %v502, 33
      %v504 = vpop.permute.xlu0 %503
      %vm506 = vcmask 394504
      %507 = vst.msk [vmem:[#allocation2 + $0x18] sm:$0x3] %vm506, %v504
      %v508 = vld [vmem:[#allocation2] sm:$0x3]
      %v509 = vld [vmem:[#allocation2 + $0x8] sm:$0x3]
      %v510 = vld [vmem:[#allocation2 + $0x10] sm:$0x3]
      %v511 = vld [vmem:[#allocation2 + $0x18] sm:$0x3]
      %516 = vrot.lane.b32.xlu0 %v508, 19
      %v517 = vpop.permute.xlu0 %516
      %518 = vrot.lane.b32.xlu0 %v509, 19
      %v519 = vpop.permute.xlu0 %518
      %520 = vrot.lane.b32.xlu0 %v510, 19
      %v521 = vpop.permute.xlu0 %520
      %522 = vrot.lane.b32.xlu0 %v511, 19
      %v523 = vpop.permute.xlu0 %522
      %vm524 = vcmask 154624
      %v525 = vsel %vm524, %v517, %v519
      %v526 = vsel %vm524, %v519, %v521
      %v527 = vsel %vm524, %v521, %v523
      %531 = vst [vmem:[#allocation4] sm:$0x3] %v525
      %532 = vst [vmem:[#allocation4 + $0x8] sm:$0x3] %v526
      %533 = vst [vmem:[#allocation4 + $0x10] sm:$0x3] %v527
      %v534 = vld [vmem:[#allocation2] sm:$0x3]
      %v535 = vld [vmem:[#allocation2 + $0x8] sm:$0x3]
      %v536 = vld [vmem:[#allocation2 + $0x10] sm:$0x3]
      %v537 = vld [vmem:[#allocation2 + $0x18] sm:$0x3]
      %v542 = vrot.slane %v534, 6
      %v543 = vrot.slane %v535, 6
      %v544 = vrot.slane %v536, 6
      %v545 = vrot.slane %v537, 6
      %546 = vrot.lane.b32.xlu0 %v542, 18
      %v547 = vpop.permute.xlu0 %546
      %548 = vrot.lane.b32.xlu0 %v543, 18
      %v549 = vpop.permute.xlu0 %548
      %550 = vrot.lane.b32.xlu0 %v544, 18
      %v551 = vpop.permute.xlu0 %550
      %552 = vrot.lane.b32.xlu0 %v545, 18
      %v553 = vpop.permute.xlu0 %552
      %vm554 = vcmask 146432
      %v555 = vsel %vm554, %v547, %v549
      %v556 = vsel %vm554, %v549, %v551
      %v557 = vsel %vm554, %v551, %v553
      %561 = vst [vmem:[#allocation4] sm:$0xc] %v555
      %562 = vst [vmem:[#allocation4 + $0x8] sm:$0xc] %v556
      %563 = vst [vmem:[#allocation4 + $0x10] sm:$0xc] %v557
      %v564 = vld [vmem:[#allocation2] sm:$0x3]
      %v565 = vld [vmem:[#allocation2 + $0x8] sm:$0x3]
      %v566 = vld [vmem:[#allocation2 + $0x10] sm:$0x3]
      %v567 = vld [vmem:[#allocation2 + $0x18] sm:$0x3]
      %v572 = vrot.slane %v564, 4
      %v573 = vrot.slane %v565, 4
      %v574 = vrot.slane %v566, 4
      %v575 = vrot.slane %v567, 4
      %576 = vrot.lane.b32.xlu0 %v572, 17
      %v577 = vpop.permute.xlu0 %576
      %578 = vrot.lane.b32.xlu0 %v573, 17
      %v579 = vpop.permute.xlu0 %578
      %580 = vrot.lane.b32.xlu0 %v574, 17
      %v581 = vpop.permute.xlu0 %580
      %582 = vrot.lane.b32.xlu0 %v575, 17
      %v583 = vpop.permute.xlu0 %582
      %vm584 = vcmask 138240
      %v585 = vsel %vm584, %v577, %v579
      %v586 = vsel %vm584, %v579, %v581
      %v587 = vsel %vm584, %v581, %v583
      %591 = vst [vmem:[#allocation4] sm:$0x30] %v585
      %592 = vst [vmem:[#allocation4 + $0x8] sm:$0x30] %v586
      %593 = vst [vmem:[#allocation4 + $0x10] sm:$0x30] %v587
      %v594 = vld [vmem:[#allocation2] sm:$0x3]
      %v595 = vld [vmem:[#allocation2 + $0x8] sm:$0x3]
      %v596 = vld [vmem:[#allocation2 + $0x10] sm:$0x3]
      %v597 = vld [vmem:[#allocation2 + $0x18] sm:$0x3]
      %v602 = vrot.slane %v594, 2
      %v603 = vrot.slane %v595, 2
      %v604 = vrot.slane %v596, 2
      %v605 = vrot.slane %v597, 2
      %606 = vrot.lane.b32.xlu0 %v602, 1
      %v607 = vpop.permute.xlu0 %606
      %608 = vrot.lane.b32.xlu0 %v603, 1
      %v609 = vpop.permute.xlu0 %608
      %610 = vrot.lane.b32.xlu0 %v604, 1
      %v611 = vpop.permute.xlu0 %610
      %612 = vrot.lane.b32.xlu0 %v605, 1
      %v613 = vpop.permute.xlu0 %612
      %vm614 = vcmask 7168
      %v615 = vsel %vm614, %v607, %v609
      %v616 = vsel %vm614, %v609, %v611
      %v617 = vsel %vm614, %v611, %v613
      %621 = vst [vmem:[#allocation4] sm:$0xc0] %v615
      %622 = vst [vmem:[#allocation4 + $0x8] sm:$0xc0] %v616
      %623 = vst [vmem:[#allocation4 + $0x10] sm:$0xc0] %v617
      %v624 = vld [vmem:[#allocation2 + $0x8] sm:$0x3]
      %v625 = vld [vmem:[#allocation2 + $0x10] sm:$0x3]
      %v626 = vld [vmem:[#allocation2 + $0x18] sm:$0x3]
      %627 = vst [vmem:[#allocation4 + $0x18] sm:$0x3] %v624
      %628 = vst [vmem:[#allocation4 + $0x20] sm:$0x3] %v625
      %629 = vst [vmem:[#allocation4 + $0x28] sm:$0x3] %v626
      %v630 = vld [vmem:[#allocation2 + $0x8] sm:$0x3]
      %v631 = vld [vmem:[#allocation2 + $0x10] sm:$0x3]
      %v632 = vld [vmem:[#allocation2 + $0x18] sm:$0x3]
      %v633 = vld [vmem:[#allocation2 + $0x20] sm:$0x3]
      %v638 = vrot.slane %v630, 6
      %v639 = vrot.slane %v631, 6
      %v640 = vrot.slane %v632, 6
      %v641 = vrot.slane %v633, 6
      %642 = vrot.lane.b32.xlu0 %v638, 127
      %v643 = vpop.permute.xlu0 %642
      %644 = vrot.lane.b32.xlu0 %v639, 127
      %v645 = vpop.permute.xlu0 %644
      %646 = vrot.lane.b32.xlu0 %v640, 127
      %v647 = vpop.permute.xlu0 %646
      %648 = vrot.lane.b32.xlu0 %v641, 127
      %v649 = vpop.permute.xlu0 %648
      %vm650 = vcmask 1039360
      %v651 = vsel %vm650, %v643, %v645
      %v652 = vsel %vm650, %v645, %v647
      %v653 = vsel %vm650, %v647, %v649
      %657 = vst [vmem:[#allocation4 + $0x18] sm:$0xc] %v651
      %658 = vst [vmem:[#allocation4 + $0x20] sm:$0xc] %v652
      %659 = vst [vmem:[#allocation4 + $0x28] sm:$0xc] %v653
      %v660 = vld [vmem:[#allocation2 + $0x8] sm:$0x3]
      %v661 = vld [vmem:[#allocation2 + $0x10] sm:$0x3]
      %v662 = vld [vmem:[#allocation2 + $0x18] sm:$0x3]
      %v663 = vld [vmem:[#allocation2 + $0x20] sm:$0x3]
      %v668 = vrot.slane %v660, 4
      %v669 = vrot.slane %v661, 4
      %v670 = vrot.slane %v662, 4
      %v671 = vrot.slane %v663, 4
      %672 = vrot.lane.b32.xlu0 %v668, 111
      %v673 = vpop.permute.xlu0 %672
      %674 = vrot.lane.b32.xlu0 %v669, 111
      %v675 = vpop.permute.xlu0 %674
      %676 = vrot.lane.b32.xlu0 %v670, 111
      %v677 = vpop.permute.xlu0 %676
      %678 = vrot.lane.b32.xlu0 %v671, 111
      %v679 = vpop.permute.xlu0 %678
      %vm680 = vcmask 908288
      %v681 = vsel %vm680, %v673, %v675
      %v682 = vsel %vm680, %v675, %v677
      %v683 = vsel %vm680, %v677, %v679
      %687 = vst [vmem:[#allocation4 + $0x18] sm:$0x30] %v681
      %688 = vst [vmem:[#allocation4 + $0x20] sm:$0x30] %v682
      %689 = vst [vmem:[#allocation4 + $0x28] sm:$0x30] %v683
      %v690 = vld [vmem:[#allocation2 + $0x8] sm:$0x3]
      %v691 = vld [vmem:[#allocation2 + $0x10] sm:$0x3]
      %v692 = vld [vmem:[#allocation2 + $0x18] sm:$0x3]
      %v693 = vld [vmem:[#allocation2 + $0x20] sm:$0x3]
      %v698 = vrot.slane %v690, 2
      %v699 = vrot.slane %v691, 2
      %v700 = vrot.slane %v692, 2
      %v701 = vrot.slane %v693, 2
      %702 = vrot.lane.b32.xlu0 %v698, 110
      %v703 = vpop.permute.xlu0 %702
      %704 = vrot.lane.b32.xlu0 %v699, 110
      %v705 = vpop.permute.xlu0 %704
      %706 = vrot.lane.b32.xlu0 %v700, 110
      %v707 = vpop.permute.xlu0 %706
      %708 = vrot.lane.b32.xlu0 %v701, 110
      %v709 = vpop.permute.xlu0 %708
      %vm710 = vcmask 900096
      %v711 = vsel %vm710, %v703, %v705
      %v712 = vsel %vm710, %v705, %v707
      %v713 = vsel %vm710, %v707, %v709
      %717 = vst [vmem:[#allocation4 + $0x18] sm:$0xc0] %v711
      %718 = vst [vmem:[#allocation4 + $0x20] sm:$0xc0] %v712
      %719 = vst [vmem:[#allocation4 + $0x28] sm:$0xc0] %v713
      %v720 = vld [vmem:[#allocation2 + $0x8] sm:$0x3]
      %v721 = vld [vmem:[#allocation2 + $0x10] sm:$0x3]
      %v722 = vld [vmem:[#allocation2 + $0x18] sm:$0x3]
      %v723 = vld [vmem:[#allocation2 + $0x20] sm:$0x3]
      %728 = vrot.lane.b32.xlu0 %v720, 109
      %v729 = vpop.permute.xlu0 %728
      %730 = vrot.lane.b32.xlu0 %v721, 109
      %v731 = vpop.permute.xlu0 %730
      %732 = vrot.lane.b32.xlu0 %v722, 109
      %v733 = vpop.permute.xlu0 %732
      %734 = vrot.lane.b32.xlu0 %v723, 109
      %v735 = vpop.permute.xlu0 %734
      %vm736 = vcmask 891904
      %v737 = vsel %vm736, %v729, %v731
      %v738 = vsel %vm736, %v731, %v733
      %v739 = vsel %vm736, %v733, %v735
      %743 = vst [vmem:[#allocation4 + $0x30] sm:$0x3] %v737
      %744 = vst [vmem:[#allocation4 + $0x38] sm:$0x3] %v738
      %745 = vst [vmem:[#allocation4 + $0x40] sm:$0x3] %v739
      %v746 = vld [vmem:[%s2] sm:$0xff]
      %v747 = vld [vmem:[%s2 + $0x8] sm:$0xff]
      %v748 = vld [vmem:[#allocation4] sm:$0xff]
      %v749 = vld [vmem:[#allocation4 + $0x8] sm:$0xff]
      %v750 = vld [vmem:[#allocation4 + $0x10] sm:$0xff]
      %v751 = vld [vmem:[#allocation4 + $0x18] sm:$0xff]
      %v752 = vld [vmem:[#allocation4 + $0x20] sm:$0xff]
      %v753 = vld [vmem:[#allocation4 + $0x28] sm:$0xff]
      %v754 = vld [vmem:[#allocation4 + $0x30] sm:$0x3]
      %v755 = vld [vmem:[#allocation4 + $0x38] sm:$0x3]
      %v756 = vld [vmem:[#allocation4 + $0x40] sm:$0x3]
      %v757 = vld [vmem:[%s3] sm:$0xff]
      %v758 = vld [vmem:[%s3 + $0x8] sm:$0xff]
      %760 = vset.pattern.permute.xlu0 0
      %761 = vperm.xlu0 %760, %v757
      %v762 = vpop.permute.xlu0 %761
      %765 = vset.pattern.permute.xlu0 0
      %766 = vperm.xlu0 %765, %v758
      %v767 = vpop.permute.xlu0 %766
      %v770 = vsel %vm554, %v746, 0
      %v773 = vsel %vm554, %v747, 0
      %vm775 = vcmask 1041408
      %v777 = vsel %vm775, %v754, 0
      %v780 = vsel %vm775, %v755, 0
      %v783 = vsel %vm775, %v756, 0
      %785 = vmatprep.subr.mxu0 %v749
      %786 = vmatpush1.msra.mxu0 %v748
      %787 = vmatprep.subr.mxu0 %v752
      %788 = vmatpush1.msra.mxu0 %v751
      %789 = vmatprep.subr.mxu0 %v780
      %790 = vmatpush1.msra.mxu0 %v777
      %791 = vmatprep.subr.mxu0 0.0
      %792 = vmatpush1.msra.mxu0 0.0
      %793 = vmatprep.subr.mxu0 0.0
      %794 = vmatpush1.msra.mxu0 0.0
      %795 = vmatprep.subr.mxu0 0.0
      %796 = vmatpush1.msra.mxu0 0.0
      %797 = vmatprep.subr.mxu0 0.0
      %798 = vmatpush1.msra.mxu0 0.0
      %799 = vmatprep.subr.mxu0 0.0
      %800 = vmatpush1.msra.mxu0 0.0
      %801 = vmatprep.subr.mxu0 0.0
      %802 = vmatpush1.msra.mxu0 0.0
      %803 = vmatprep.subr.mxu0 0.0
      %804 = vmatpush1.msra.mxu0 0.0
      %805 = vmatprep.subr.mxu0 0.0
      %806 = vmatpush1.msra.mxu0 0.0
      %807 = vmatprep.subr.mxu0 0.0
      %808 = vmatpush1.msra.mxu0 0.0
      %809 = vmatprep.subr.mxu0 0.0
      %810 = vmatpush1.msra.mxu0 0.0
      %811 = vmatprep.subr.mxu0 0.0
      %812 = vmatpush1.msra.mxu0 0.0
      %813 = vmatprep.subr.mxu0 0.0
      %814 = vmatpush1.msra.mxu0 0.0
      %815 = vmatprep.subr.mxu0 0.0
      %816 = vmatpush1.msra.mxu0 0.0
      %817 = vmatprep.subr.mxu0 0.0
      %818 = vmatpush1.msra.mxu0 0.0
      %819 = vmatprep.subr.mxu0 0.0
      %820 = vmatpush1.msra.mxu0 0.0
      %821 = vmatprep.subr.mxu0 0.0
      %822 = vmatpush1.msra.mxu0 0.0
      %823 = vmatprep.subr.mxu0 0.0
      %824 = vmatpush1.msra.mxu0 0.0
      %825 = vmatprep.subr.mxu0 0.0
      %826 = vmatpush1.msra.mxu0 0.0
      %827 = vmatprep.subr.mxu0 0.0
      %828 = vmatpush1.msra.mxu0 0.0
      %829 = vmatprep.subr.mxu0 0.0
      %830 = vmatpush1.msra.mxu0 0.0
      %831 = vmatprep.subr.mxu0 0.0
      %832 = vmatpush1.msra.mxu0 0.0
      %833 = vmatprep.subr.mxu0 0.0
      %834 = vmatpush1.msra.mxu0 0.0
      %835 = vmatprep.subr.mxu0 0.0
      %836 = vmatpush1.msra.mxu0 0.0
      %837 = vmatprep.subr.mxu0 0.0
      %838 = vmatpush1.msra.mxu0 0.0
      %839 = vmatprep.subr.mxu0 0.0
      %840 = vmatpush1.msra.mxu0 0.0
      %841 = vmatprep.subr.mxu0 0.0
      %842 = vmatpush1.msra.mxu0 0.0
      %843 = vmatprep.subr.mxu0 0.0
      %844 = vmatpush1.msra.mxu0 0.0
      %845 = vmatprep.subr.mxu0 0.0
      %846 = vmatpush1.msra.mxu0 0.0
      %847 = vmatprep.subr.mxu0 0.0
      %848 = vmatpush1.msra.mxu0 0.0
      %849 = vmatprep.mubr.f32.mxu0 0.0
      %850 = vmatmul.mubr.f32.gmra.mrb[0].mxu0 %v770
      %v851 = vpop.f32.mrb[0].mxu0
      %v852 = vadd.f32 %v762, %v851
      %v853 = vpop.f32.mrb[0].mxu0
      %v854 = vadd.f32 %v762, %v853
      %855 = vmatprep.mubr.f32.mxu0 0.0
      %856 = vmatmul.mubr.f32.gmra.mrb[0].mxu0 %v773
      %v857 = vpop.f32.mrb[0].mxu0
      %v858 = vadd.f32 %v767, %v857
      %v859 = vpop.f32.mrb[0].mxu0
      %v860 = vadd.f32 %v767, %v859
      %861 = vdwg.mxu0
      %862 = vmatprep.subr.mxu0 0.0
      %863 = vmatpush1.msra.mxu0 %v750
      %864 = vmatprep.subr.mxu0 0.0
      %865 = vmatpush1.msra.mxu0 %v753
      %866 = vmatprep.subr.mxu0 0.0
      %867 = vmatpush1.msra.mxu0 %v783
      %868 = vmatprep.subr.mxu0 0.0
      %869 = vmatpush1.msra.mxu0 0.0
      %870 = vmatprep.subr.mxu0 0.0
      %871 = vmatpush1.msra.mxu0 0.0
      %872 = vmatprep.subr.mxu0 0.0
      %873 = vmatpush1.msra.mxu0 0.0
      %874 = vmatprep.subr.mxu0 0.0
      %875 = vmatpush1.msra.mxu0 0.0
      %876 = vmatprep.subr.mxu0 0.0
      %877 = vmatpush1.msra.mxu0 0.0
      %878 = vmatprep.subr.mxu0 0.0
      %879 = vmatpush1.msra.mxu0 0.0
      %880 = vmatprep.subr.mxu0 0.0
      %881 = vmatpush1.msra.mxu0 0.0
      %882 = vmatprep.subr.mxu0 0.0
      %883 = vmatpush1.msra.mxu0 0.0
      %884 = vmatprep.subr.mxu0 0.0
      %885 = vmatpush1.msra.mxu0 0.0
      %886 = vmatprep.subr.mxu0 0.0
      %887 = vmatpush1.msra.mxu0 0.0
      %888 = vmatprep.subr.mxu0 0.0
      %889 = vmatpush1.msra.mxu0 0.0
      %890 = vmatprep.subr.mxu0 0.0
      %891 = vmatpush1.msra.mxu0 0.0
      %892 = vmatprep.subr.mxu0 0.0
      %893 = vmatpush1.msra.mxu0 0.0
      %894 = vmatprep.subr.mxu0 0.0
      %895 = vmatpush1.msra.mxu0 0.0
      %896 = vmatprep.subr.mxu0 0.0
      %897 = vmatpush1.msra.mxu0 0.0
      %898 = vmatprep.subr.mxu0 0.0
      %899 = vmatpush1.msra.mxu0 0.0
      %900 = vmatprep.subr.mxu0 0.0
      %901 = vmatpush1.msra.mxu0 0.0
      %902 = vmatprep.subr.mxu0 0.0
      %903 = vmatpush1.msra.mxu0 0.0
      %904 = vmatprep.subr.mxu0 0.0
      %905 = vmatpush1.msra.mxu0 0.0
      %906 = vmatprep.subr.mxu0 0.0
      %907 = vmatpush1.msra.mxu0 0.0
      %908 = vmatprep.subr.mxu0 0.0
      %909 = vmatpush1.msra.mxu0 0.0
      %910 = vmatprep.subr.mxu0 0.0
      %911 = vmatpush1.msra.mxu0 0.0
      %912 = vmatprep.subr.mxu0 0.0
      %913 = vmatpush1.msra.mxu0 0.0
      %914 = vmatprep.subr.mxu0 0.0
      %915 = vmatpush1.msra.mxu0 0.0
      %916 = vmatprep.subr.mxu0 0.0
      %917 = vmatpush1.msra.mxu0 0.0
      %918 = vmatprep.subr.mxu0 0.0
      %919 = vmatpush1.msra.mxu0 0.0
      %920 = vmatprep.subr.mxu0 0.0
      %921 = vmatpush1.msra.mxu0 0.0
      %922 = vmatprep.subr.mxu0 0.0
      %923 = vmatpush1.msra.mxu0 0.0
      %924 = vmatprep.subr.mxu0 0.0
      %925 = vmatpush1.msra.mxu0 0.0
      %926 = vmatprep.mubr.f32.mxu0 0.0
      %927 = vmatmul.mubr.f32.gmra.mrb[0].mxu0 %v770
      %v928 = vpop.f32.mrb[0].mxu0
      %v929 = vadd.f32 %v762, %v928
      %v930 = vpop.f32.mrb[0].mxu0
      %931 = vmatprep.mubr.f32.mxu0 0.0
      %932 = vmatmul.mubr.f32.gmra.mrb[0].mxu0 %v773
      %v933 = vpop.f32.mrb[0].mxu0
      %v934 = vadd.f32 %v767, %v933
      %v935 = vpop.f32.mrb[0].mxu0
      %936 = vdwg.mxu0
      %vm937 = vcmp.ge.f32.partialorder %v852, 0.0
      %vm938 = vcmp.ge.f32.partialorder %v854, 0.0
      %vm939 = vcmp.ge.f32.partialorder %v929, 0.0
      %vm940 = vcmp.ge.f32.partialorder %v858, 0.0
      %vm941 = vcmp.ge.f32.partialorder %v860, 0.0
      %vm942 = vcmp.ge.f32.partialorder %v934, 0.0
      %v943 = vmul.f32 %v852, 0.01
      %v944 = vmul.f32 %v854, 0.01
      %v945 = vmul.f32 %v929, 0.01
      %v946 = vmul.f32 %v858, 0.01
      %v947 = vmul.f32 %v860, 0.01
      %v948 = vmul.f32 %v934, 0.01
      %v949 = vsel %vm937, %v852, %v943
      %v950 = vsel %vm938, %v854, %v944
      %v951 = vsel %vm939, %v929, %v945
      %v952 = vsel %vm940, %v858, %v946
      %v953 = vsel %vm941, %v860, %v947
      %v954 = vsel %vm942, %v934, %v948
      %v956 = vlaneseq
      %v957 = vshrl.u32 %v956, 7
      %v958 = vsub.s32 0, %v957
      %v959 = vrot.slane %v306, %v958
      %v960 = vlaneseq
      %v961 = vshrl.u32 %v960, 7
      %v962 = vsub.s32 1, %v961
      %v963 = vrot.slane %v306, %v962
      %v964 = vlaneseq
      %v965 = vshrl.u32 %v964, 7
      %v966 = vsub.s32 2, %v965
      %v967 = vrot.slane %v306, %v966
      %v971 = vmul.f32 %v949, %v959
      %v972 = vmul.f32 %v950, %v963
      %v973 = vmul.f32 %v951, %v967
      %v974 = vmul.f32 %v952, %v959
      %v975 = vmul.f32 %v953, %v963
      %v976 = vmul.f32 %v954, %v967
      %977 = vst [vmem:[#allocation3 + $0x8] sm:$0xff] %v971
      %978 = vst [vmem:[#allocation3 + $0x10] sm:$0xff] %v972
      %979 = vst [vmem:[#allocation3 + $0x18] sm:$0xff] %v973
      %980 = vst [vmem:[#allocation3 + $0x30] sm:$0xff] %v974
      %981 = vst [vmem:[#allocation3 + $0x38] sm:$0xff] %v975
      %982 = vst [vmem:[#allocation3 + $0x40] sm:$0xff] %v976
      %v983 = vld [vmem:[#allocation3] sm:$0xff]
      %v984 = vld [vmem:[#allocation3 + $0x8] sm:$0xff]
      %v985 = vld [vmem:[#allocation3 + $0x10] sm:$0xff]
      %v986 = vld [vmem:[#allocation3 + $0x18] sm:$0xff]
      %v987 = vld [vmem:[#allocation3 + $0x28] sm:$0xff]
      %v988 = vld [vmem:[#allocation3 + $0x30] sm:$0xff]
      %v989 = vld [vmem:[#allocation3 + $0x38] sm:$0xff]
      %v990 = vld [vmem:[#allocation3 + $0x40] sm:$0xff]
      %999 = vrot.lane.b32.xlu0 %v983, 19
      %v1000 = vpop.permute.xlu0 %999
      %1001 = vrot.lane.b32.xlu0 %v984, 19
      %v1002 = vpop.permute.xlu0 %1001
      %1003 = vrot.lane.b32.xlu0 %v985, 19
      %v1004 = vpop.permute.xlu0 %1003
      %1005 = vrot.lane.b32.xlu0 %v986, 19
      %v1006 = vpop.permute.xlu0 %1005
      %1007 = vrot.lane.b32.xlu0 %v987, 19
      %v1008 = vpop.permute.xlu0 %1007
      %1009 = vrot.lane.b32.xlu0 %v988, 19
      %v1010 = vpop.permute.xlu0 %1009
      %1011 = vrot.lane.b32.xlu0 %v989, 19
      %v1012 = vpop.permute.xlu0 %1011
      %1013 = vrot.lane.b32.xlu0 %v990, 19
      %v1014 = vpop.permute.xlu0 %1013
      %v1015 = vsel %vm524, %v1000, %v1002
      %v1016 = vsel %vm524, %v1002, %v1004
      %v1017 = vsel %vm524, %v1004, %v1006
      %v1018 = vsel %vm524, %v1008, %v1010
      %v1019 = vsel %vm524, %v1010, %v1012
      %v1020 = vsel %vm524, %v1012, %v1014
      %1027 = vst [vmem:[#allocation4] sm:$0xff] %v1015
      %1028 = vst [vmem:[#allocation4 + $0x8] sm:$0xff] %v1016
      %1029 = vst [vmem:[#allocation4 + $0x10] sm:$0xff] %v1017
      %1030 = vst [vmem:[#allocation4 + $0x18] sm:$0xff] %v1018
      %1031 = vst [vmem:[#allocation4 + $0x20] sm:$0xff] %v1019
      %1032 = vst [vmem:[#allocation4 + $0x28] sm:$0xff] %v1020
      %v1033 = vld [vmem:[#allocation3] sm:$0xff]
      %v1034 = vld [vmem:[#allocation3 + $0x8] sm:$0xff]
      %v1035 = vld [vmem:[#allocation3 + $0x10] sm:$0xff]
      %v1036 = vld [vmem:[#allocation3 + $0x18] sm:$0xff]
      %v1037 = vld [vmem:[#allocation3 + $0x28] sm:$0xff]
      %v1038 = vld [vmem:[#allocation3 + $0x30] sm:$0xff]
      %v1039 = vld [vmem:[#allocation3 + $0x38] sm:$0xff]
      %v1040 = vld [vmem:[#allocation3 + $0x40] sm:$0xff]
      %1049 = vrot.lane.b32.xlu0 %v1033, 18
      %v1050 = vpop.permute.xlu0 %1049
      %1051 = vrot.lane.b32.xlu0 %v1034, 18
      %v1052 = vpop.permute.xlu0 %1051
      %1053 = vrot.lane.b32.xlu0 %v1035, 18
      %v1054 = vpop.permute.xlu0 %1053
      %1055 = vrot.lane.b32.xlu0 %v1036, 18
      %v1056 = vpop.permute.xlu0 %1055
      %1057 = vrot.lane.b32.xlu0 %v1037, 18
      %v1058 = vpop.permute.xlu0 %1057
      %1059 = vrot.lane.b32.xlu0 %v1038, 18
      %v1060 = vpop.permute.xlu0 %1059
      %1061 = vrot.lane.b32.xlu0 %v1039, 18
      %v1062 = vpop.permute.xlu0 %1061
      %1063 = vrot.lane.b32.xlu0 %v1040, 18
      %v1064 = vpop.permute.xlu0 %1063
      %v1065 = vsel %vm554, %v1050, %v1052
      %v1066 = vsel %vm554, %v1052, %v1054
      %v1067 = vsel %vm554, %v1054, %v1056
      %v1068 = vsel %vm554, %v1058, %v1060
      %v1069 = vsel %vm554, %v1060, %v1062
      %v1070 = vsel %vm554, %v1062, %v1064
      %1077 = vst [vmem:[#allocation4 + $0x30] sm:$0xff] %v1065
      %1078 = vst [vmem:[#allocation4 + $0x38] sm:$0xff] %v1066
      %1079 = vst [vmem:[#allocation4 + $0x40] sm:$0xff] %v1067
      %1080 = vst [vmem:[#allocation4 + $0x48] sm:$0xff] %v1068
      %1081 = vst [vmem:[#allocation4 + $0x50] sm:$0xff] %v1069
      %1082 = vst [vmem:[#allocation4 + $0x58] sm:$0xff] %v1070
      %v1083 = vld [vmem:[#allocation3] sm:$0xff]
      %v1084 = vld [vmem:[#allocation3 + $0x8] sm:$0xff]
      %v1085 = vld [vmem:[#allocation3 + $0x10] sm:$0xff]
      %v1086 = vld [vmem:[#allocation3 + $0x18] sm:$0xff]
      %v1087 = vld [vmem:[#allocation3 + $0x28] sm:$0xff]
      %v1088 = vld [vmem:[#allocation3 + $0x30] sm:$0xff]
      %v1089 = vld [vmem:[#allocation3 + $0x38] sm:$0xff]
      %v1090 = vld [vmem:[#allocation3 + $0x40] sm:$0xff]
      %1099 = vrot.lane.b32.xlu0 %v1083, 17
      %v1100 = vpop.permute.xlu0 %1099
      %1101 = vrot.lane.b32.xlu0 %v1084, 17
      %v1102 = vpop.permute.xlu0 %1101
      %1103 = vrot.lane.b32.xlu0 %v1085, 17
      %v1104 = vpop.permute.xlu0 %1103
      %1105 = vrot.lane.b32.xlu0 %v1086, 17
      %v1106 = vpop.permute.xlu0 %1105
      %1107 = vrot.lane.b32.xlu0 %v1087, 17
      %v1108 = vpop.permute.xlu0 %1107
      %1109 = vrot.lane.b32.xlu0 %v1088, 17
      %v1110 = vpop.permute.xlu0 %1109
      %1111 = vrot.lane.b32.xlu0 %v1089, 17
      %v1112 = vpop.permute.xlu0 %1111
      %1113 = vrot.lane.b32.xlu0 %v1090, 17
      %v1114 = vpop.permute.xlu0 %1113
      %v1115 = vsel %vm584, %v1100, %v1102
      %v1116 = vsel %vm584, %v1102, %v1104
      %v1117 = vsel %vm584, %v1104, %v1106
      %v1118 = vsel %vm584, %v1108, %v1110
      %v1119 = vsel %vm584, %v1110, %v1112
      %v1120 = vsel %vm584, %v1112, %v1114
      %1127 = vst [vmem:[#allocation4 + $0x60] sm:$0xff] %v1115
      %1128 = vst [vmem:[#allocation4 + $0x68] sm:$0xff] %v1116
      %1129 = vst [vmem:[#allocation4 + $0x70] sm:$0xff] %v1117
      %1130 = vst [vmem:[#allocation4 + $0x78] sm:$0xff] %v1118
      %1131 = vst [vmem:[#allocation4 + $0x80] sm:$0xff] %v1119
      %1132 = vst [vmem:[#allocation4 + $0x88] sm:$0xff] %v1120
      %v1133 = vld [vmem:[#allocation3] sm:$0xff]
      %v1134 = vld [vmem:[#allocation3 + $0x8] sm:$0xff]
      %v1135 = vld [vmem:[#allocation3 + $0x10] sm:$0xff]
      %v1136 = vld [vmem:[#allocation3 + $0x18] sm:$0xff]
      %v1137 = vld [vmem:[#allocation3 + $0x28] sm:$0xff]
      %v1138 = vld [vmem:[#allocation3 + $0x30] sm:$0xff]
      %v1139 = vld [vmem:[#allocation3 + $0x38] sm:$0xff]
      %v1140 = vld [vmem:[#allocation3 + $0x40] sm:$0xff]
      %1149 = vrot.lane.b32.xlu0 %v1133, 1
      %v1150 = vpop.permute.xlu0 %1149
      %1151 = vrot.lane.b32.xlu0 %v1134, 1
      %v1152 = vpop.permute.xlu0 %1151
      %1153 = vrot.lane.b32.xlu0 %v1135, 1
      %v1154 = vpop.permute.xlu0 %1153
      %1155 = vrot.lane.b32.xlu0 %v1136, 1
      %v1156 = vpop.permute.xlu0 %1155
      %1157 = vrot.lane.b32.xlu0 %v1137, 1
      %v1158 = vpop.permute.xlu0 %1157
      %1159 = vrot.lane.b32.xlu0 %v1138, 1
      %v1160 = vpop.permute.xlu0 %1159
      %1161 = vrot.lane.b32.xlu0 %v1139, 1
      %v1162 = vpop.permute.xlu0 %1161
      %1163 = vrot.lane.b32.xlu0 %v1140, 1
      %v1164 = vpop.permute.xlu0 %1163
      %v1165 = vsel %vm614, %v1150, %v1152
      %v1166 = vsel %vm614, %v1152, %v1154
      %v1167 = vsel %vm614, %v1154, %v1156
      %v1168 = vsel %vm614, %v1158, %v1160
      %v1169 = vsel %vm614, %v1160, %v1162
      %v1170 = vsel %vm614, %v1162, %v1164
      %1177 = vst [vmem:[#allocation4 + $0x90] sm:$0xff] %v1165
      %1178 = vst [vmem:[#allocation4 + $0x98] sm:$0xff] %v1166
      %1179 = vst [vmem:[#allocation4 + $0xa0] sm:$0xff] %v1167
      %1180 = vst [vmem:[#allocation4 + $0xa8] sm:$0xff] %v1168
      %1181 = vst [vmem:[#allocation4 + $0xb0] sm:$0xff] %v1169
      %1182 = vst [vmem:[#allocation4 + $0xb8] sm:$0xff] %v1170
      %v1183 = vld [vmem:[#allocation3 + $0x8] sm:$0xff]
      %v1184 = vld [vmem:[#allocation3 + $0x10] sm:$0xff]
      %v1185 = vld [vmem:[#allocation3 + $0x18] sm:$0xff]
      %v1186 = vld [vmem:[#allocation3 + $0x30] sm:$0xff]
      %v1187 = vld [vmem:[#allocation3 + $0x38] sm:$0xff]
      %v1188 = vld [vmem:[#allocation3 + $0x40] sm:$0xff]
      %1189 = vst [vmem:[#allocation4 + $0xc0] sm:$0xff] %v1183
      %1190 = vst [vmem:[#allocation4 + $0xc8] sm:$0xff] %v1184
      %1191 = vst [vmem:[#allocation4 + $0xd0] sm:$0xff] %v1185
      %1192 = vst [vmem:[#allocation4 + $0xd8] sm:$0xff] %v1186
      %1193 = vst [vmem:[#allocation4 + $0xe0] sm:$0xff] %v1187
      %1194 = vst [vmem:[#allocation4 + $0xe8] sm:$0xff] %v1188
      %v1195 = vld [vmem:[#allocation3 + $0x8] sm:$0xff]
      %v1196 = vld [vmem:[#allocation3 + $0x10] sm:$0xff]
      %v1197 = vld [vmem:[#allocation3 + $0x18] sm:$0xff]
      %v1198 = vld [vmem:[#allocation3 + $0x20] sm:$0xff]
      %v1199 = vld [vmem:[#allocation3 + $0x30] sm:$0xff]
      %v1200 = vld [vmem:[#allocation3 + $0x38] sm:$0xff]
      %v1201 = vld [vmem:[#allocation3 + $0x40] sm:$0xff]
      %v1202 = vld [vmem:[#allocation3 + $0x48] sm:$0xff]
      %1211 = vrot.lane.b32.xlu0 %v1195, 127
      %v1212 = vpop.permute.xlu0 %1211
      %1213 = vrot.lane.b32.xlu0 %v1196, 127
      %v1214 = vpop.permute.xlu0 %1213
      %1215 = vrot.lane.b32.xlu0 %v1197, 127
      %v1216 = vpop.permute.xlu0 %1215
      %1217 = vrot.lane.b32.xlu0 %v1198, 127
      %v1218 = vpop.permute.xlu0 %1217
      %1219 = vrot.lane.b32.xlu0 %v1199, 127
      %v1220 = vpop.permute.xlu0 %1219
      %1221 = vrot.lane.b32.xlu0 %v1200, 127
      %v1222 = vpop.permute.xlu0 %1221
      %1223 = vrot.lane.b32.xlu0 %v1201, 127
      %v1224 = vpop.permute.xlu0 %1223
      %1225 = vrot.lane.b32.xlu0 %v1202, 127
      %v1226 = vpop.permute.xlu0 %1225
      %v1227 = vsel %vm650, %v1212, %v1214
      %v1228 = vsel %vm650, %v1214, %v1216
      %v1229 = vsel %vm650, %v1216, %v1218
      %v1230 = vsel %vm650, %v1220, %v1222
      %v1231 = vsel %vm650, %v1222, %v1224
      %v1232 = vsel %vm650, %v1224, %v1226
      %1239 = vst [vmem:[#allocation4 + $0xf0] sm:$0xff] %v1227
      %1240 = vst [vmem:[#allocation4 + $0xf8] sm:$0xff] %v1228
      %1241 = vst [vmem:[#allocation4 + $0x100] sm:$0xff] %v1229
      %1242 = vst [vmem:[#allocation4 + $0x108] sm:$0xff] %v1230
      %1243 = vst [vmem:[#allocation4 + $0x110] sm:$0xff] %v1231
      %1244 = vst [vmem:[#allocation4 + $0x118] sm:$0xff] %v1232
      %v1245 = vld [vmem:[#allocation3 + $0x8] sm:$0xff]
      %v1246 = vld [vmem:[#allocation3 + $0x10] sm:$0xff]
      %v1247 = vld [vmem:[#allocation3 + $0x18] sm:$0xff]
      %v1248 = vld [vmem:[#allocation3 + $0x20] sm:$0xff]
      %v1249 = vld [vmem:[#allocation3 + $0x30] sm:$0xff]
      %v1250 = vld [vmem:[#allocation3 + $0x38] sm:$0xff]
      %v1251 = vld [vmem:[#allocation3 + $0x40] sm:$0xff]
      %v1252 = vld [vmem:[#allocation3 + $0x48] sm:$0xff]
      %1261 = vrot.lane.b32.xlu0 %v1245, 111
      %v1262 = vpop.permute.xlu0 %1261
      %1263 = vrot.lane.b32.xlu0 %v1246, 111
      %v1264 = vpop.permute.xlu0 %1263
      %1265 = vrot.lane.b32.xlu0 %v1247, 111
      %v1266 = vpop.permute.xlu0 %1265
      %1267 = vrot.lane.b32.xlu0 %v1248, 111
      %v1268 = vpop.permute.xlu0 %1267
      %1269 = vrot.lane.b32.xlu0 %v1249, 111
      %v1270 = vpop.permute.xlu0 %1269
      %1271 = vrot.lane.b32.xlu0 %v1250, 111
      %v1272 = vpop.permute.xlu0 %1271
      %1273 = vrot.lane.b32.xlu0 %v1251, 111
      %v1274 = vpop.permute.xlu0 %1273
      %1275 = vrot.lane.b32.xlu0 %v1252, 111
      %v1276 = vpop.permute.xlu0 %1275
      %v1277 = vsel %vm680, %v1262, %v1264
      %v1278 = vsel %vm680, %v1264, %v1266
      %v1279 = vsel %vm680, %v1266, %v1268
      %v1280 = vsel %vm680, %v1270, %v1272
      %v1281 = vsel %vm680, %v1272, %v1274
      %v1282 = vsel %vm680, %v1274, %v1276
      %1289 = vst [vmem:[#allocation4 + $0x120] sm:$0xff] %v1277
      %1290 = vst [vmem:[#allocation4 + $0x128] sm:$0xff] %v1278
      %1291 = vst [vmem:[#allocation4 + $0x130] sm:$0xff] %v1279
      %1292 = vst [vmem:[#allocation4 + $0x138] sm:$0xff] %v1280
      %1293 = vst [vmem:[#allocation4 + $0x140] sm:$0xff] %v1281
      %1294 = vst [vmem:[#allocation4 + $0x148] sm:$0xff] %v1282
      %v1295 = vld [vmem:[#allocation3 + $0x8] sm:$0xff]
      %v1296 = vld [vmem:[#allocation3 + $0x10] sm:$0xff]
      %v1297 = vld [vmem:[#allocation3 + $0x18] sm:$0xff]
      %v1298 = vld [vmem:[#allocation3 + $0x20] sm:$0xff]
      %v1299 = vld [vmem:[#allocation3 + $0x30] sm:$0xff]
      %v1300 = vld [vmem:[#allocation3 + $0x38] sm:$0xff]
      %v1301 = vld [vmem:[#allocation3 + $0x40] sm:$0xff]
      %v1302 = vld [vmem:[#allocation3 + $0x48] sm:$0xff]
      %1311 = vrot.lane.b32.xlu0 %v1295, 110
      %v1312 = vpop.permute.xlu0 %1311
      %1313 = vrot.lane.b32.xlu0 %v1296, 110
      %v1314 = vpop.permute.xlu0 %1313
      %1315 = vrot.lane.b32.xlu0 %v1297, 110
      %v1316 = vpop.permute.xlu0 %1315
      %1317 = vrot.lane.b32.xlu0 %v1298, 110
      %v1318 = vpop.permute.xlu0 %1317
      %1319 = vrot.lane.b32.xlu0 %v1299, 110
      %v1320 = vpop.permute.xlu0 %1319
      %1321 = vrot.lane.b32.xlu0 %v1300, 110
      %v1322 = vpop.permute.xlu0 %1321
      %1323 = vrot.lane.b32.xlu0 %v1301, 110
      %v1324 = vpop.permute.xlu0 %1323
      %1325 = vrot.lane.b32.xlu0 %v1302, 110
      %v1326 = vpop.permute.xlu0 %1325
      %v1327 = vsel %vm710, %v1312, %v1314
      %v1328 = vsel %vm710, %v1314, %v1316
      %v1329 = vsel %vm710, %v1316, %v1318
      %v1330 = vsel %vm710, %v1320, %v1322
      %v1331 = vsel %vm710, %v1322, %v1324
      %v1332 = vsel %vm710, %v1324, %v1326
      %1339 = vst [vmem:[#allocation4 + $0x150] sm:$0xff] %v1327
      %1340 = vst [vmem:[#allocation4 + $0x158] sm:$0xff] %v1328
      %1341 = vst [vmem:[#allocation4 + $0x160] sm:$0xff] %v1329
      %1342 = vst [vmem:[#allocation4 + $0x168] sm:$0xff] %v1330
      %1343 = vst [vmem:[#allocation4 + $0x170] sm:$0xff] %v1331
      %1344 = vst [vmem:[#allocation4 + $0x178] sm:$0xff] %v1332
      %v1345 = vld [vmem:[#allocation3 + $0x8] sm:$0xff]
      %v1346 = vld [vmem:[#allocation3 + $0x10] sm:$0xff]
      %v1347 = vld [vmem:[#allocation3 + $0x18] sm:$0xff]
      %v1348 = vld [vmem:[#allocation3 + $0x20] sm:$0xff]
      %v1349 = vld [vmem:[#allocation3 + $0x30] sm:$0xff]
      %v1350 = vld [vmem:[#allocation3 + $0x38] sm:$0xff]
      %v1351 = vld [vmem:[#allocation3 + $0x40] sm:$0xff]
      %v1352 = vld [vmem:[#allocation3 + $0x48] sm:$0xff]
      %1361 = vrot.lane.b32.xlu0 %v1345, 109
      %v1362 = vpop.permute.xlu0 %1361
      %1363 = vrot.lane.b32.xlu0 %v1346, 109
      %v1364 = vpop.permute.xlu0 %1363
      %1365 = vrot.lane.b32.xlu0 %v1347, 109
      %v1366 = vpop.permute.xlu0 %1365
      %1367 = vrot.lane.b32.xlu0 %v1348, 109
      %v1368 = vpop.permute.xlu0 %1367
      %1369 = vrot.lane.b32.xlu0 %v1349, 109
      %v1370 = vpop.permute.xlu0 %1369
      %1371 = vrot.lane.b32.xlu0 %v1350, 109
      %v1372 = vpop.permute.xlu0 %1371
      %1373 = vrot.lane.b32.xlu0 %v1351, 109
      %v1374 = vpop.permute.xlu0 %1373
      %1375 = vrot.lane.b32.xlu0 %v1352, 109
      %v1376 = vpop.permute.xlu0 %1375
      %v1377 = vsel %vm736, %v1362, %v1364
      %v1378 = vsel %vm736, %v1364, %v1366
      %v1379 = vsel %vm736, %v1366, %v1368
      %v1380 = vsel %vm736, %v1370, %v1372
      %v1381 = vsel %vm736, %v1372, %v1374
      %v1382 = vsel %vm736, %v1374, %v1376
      %1389 = vst [vmem:[#allocation4 + $0x180] sm:$0xff] %v1377
      %1390 = vst [vmem:[#allocation4 + $0x188] sm:$0xff] %v1378
      %1391 = vst [vmem:[#allocation4 + $0x190] sm:$0xff] %v1379
      %1392 = vst [vmem:[#allocation4 + $0x198] sm:$0xff] %v1380
      %1393 = vst [vmem:[#allocation4 + $0x1a0] sm:$0xff] %v1381
      %1394 = vst [vmem:[#allocation4 + $0x1a8] sm:$0xff] %v1382
      %v1395 = vld [vmem:[%s4] sm:$0xff]
      %v1396 = vld [vmem:[%s4 + $0x8] sm:$0xff]
      %v1397 = vld [vmem:[%s4 + $0x10] sm:$0xff]
      %v1398 = vld [vmem:[%s4 + $0x18] sm:$0xff]
      %v1399 = vld [vmem:[#allocation4] sm:$0xff]
      %v1400 = vld [vmem:[#allocation4 + $0x8] sm:$0xff]
      %v1401 = vld [vmem:[#allocation4 + $0x10] sm:$0xff]
      %v1402 = vld [vmem:[#allocation4 + $0x18] sm:$0xff]
      %v1403 = vld [vmem:[#allocation4 + $0x20] sm:$0xff]
      %v1404 = vld [vmem:[#allocation4 + $0x28] sm:$0xff]
      %v1405 = vld [vmem:[#allocation4 + $0x30] sm:$0xff]
      %v1406 = vld [vmem:[#allocation4 + $0x38] sm:$0xff]
      %v1407 = vld [vmem:[#allocation4 + $0x40] sm:$0xff]
      %v1408 = vld [vmem:[#allocation4 + $0x48] sm:$0xff]
      %v1409 = vld [vmem:[#allocation4 + $0x50] sm:$0xff]
      %v1410 = vld [vmem:[#allocation4 + $0x58] sm:$0xff]
      %v1411 = vld [vmem:[#allocation4 + $0x60] sm:$0xff]
      %v1412 = vld [vmem:[#allocation4 + $0x68] sm:$0xff]
      %v1413 = vld [vmem:[#allocation4 + $0x70] sm:$0xff]
      %v1414 = vld [vmem:[#allocation4 + $0x78] sm:$0xff]
      %v1415 = vld [vmem:[#allocation4 + $0x80] sm:$0xff]
      %v1416 = vld [vmem:[#allocation4 + $0x88] sm:$0xff]
      %v1417 = vld [vmem:[#allocation4 + $0x90] sm:$0xff]
      %v1418 = vld [vmem:[#allocation4 + $0x98] sm:$0xff]
      %v1419 = vld [vmem:[#allocation4 + $0xa0] sm:$0xff]
      %v1420 = vld [vmem:[#allocation4 + $0xa8] sm:$0xff]
      %v1421 = vld [vmem:[#allocation4 + $0xb0] sm:$0xff]
      %v1422 = vld [vmem:[#allocation4 + $0xb8] sm:$0xff]
      %v1423 = vld [vmem:[#allocation4 + $0xc0] sm:$0xff]
      %v1424 = vld [vmem:[#allocation4 + $0xc8] sm:$0xff]
      %v1425 = vld [vmem:[#allocation4 + $0xd0] sm:$0xff]
      %v1426 = vld [vmem:[#allocation4 + $0xd8] sm:$0xff]
      %v1427 = vld [vmem:[#allocation4 + $0xe0] sm:$0xff]
      %v1428 = vld [vmem:[#allocation4 + $0xe8] sm:$0xff]
      %v1429 = vld [vmem:[#allocation4 + $0xf0] sm:$0xff]
      %v1430 = vld [vmem:[#allocation4 + $0xf8] sm:$0xff]
      %v1431 = vld [vmem:[#allocation4 + $0x100] sm:$0xff]
      %v1432 = vld [vmem:[#allocation4 + $0x108] sm:$0xff]
      %v1433 = vld [vmem:[#allocation4 + $0x110] sm:$0xff]
      %v1434 = vld [vmem:[#allocation4 + $0x118] sm:$0xff]
      %v1435 = vld [vmem:[#allocation4 + $0x120] sm:$0xff]
      %v1436 = vld [vmem:[#allocation4 + $0x128] sm:$0xff]
      %v1437 = vld [vmem:[#allocation4 + $0x130] sm:$0xff]
      %v1438 = vld [vmem:[#allocation4 + $0x138] sm:$0xff]
      %v1439 = vld [vmem:[#allocation4 + $0x140] sm:$0xff]
      %v1440 = vld [vmem:[#allocation4 + $0x148] sm:$0xff]
      %v1441 = vld [vmem:[#allocation4 + $0x150] sm:$0xff]
      %v1442 = vld [vmem:[#allocation4 + $0x158] sm:$0xff]
      %v1443 = vld [vmem:[#allocation4 + $0x160] sm:$0xff]
      %v1444 = vld [vmem:[#allocation4 + $0x168] sm:$0xff]
      %v1445 = vld [vmem:[#allocation4 + $0x170] sm:$0xff]
      %v1446 = vld [vmem:[#allocation4 + $0x178] sm:$0xff]
      %v1447 = vld [vmem:[#allocation4 + $0x180] sm:$0xff]
      %v1448 = vld [vmem:[#allocation4 + $0x188] sm:$0xff]
      %v1449 = vld [vmem:[#allocation4 + $0x190] sm:$0xff]
      %v1450 = vld [vmem:[#allocation4 + $0x198] sm:$0xff]
      %v1451 = vld [vmem:[#allocation4 + $0x1a0] sm:$0xff]
      %v1452 = vld [vmem:[#allocation4 + $0x1a8] sm:$0xff]
      %v1453 = vld [vmem:[%s5] sm:$0xff]
      %v1454 = vld [vmem:[%s5 + $0x8] sm:$0xff]
      %1456 = vset.pattern.permute.xlu0 0
      %1457 = vperm.xlu0 %1456, %v1453
      %v1458 = vpop.permute.xlu0 %1457
      %1461 = vset.pattern.permute.xlu0 0
      %1462 = vperm.xlu0 %1461, %v1454
      %v1463 = vpop.permute.xlu0 %1462
      %vm1465 = vcmask 130048
      %v1467 = vsel %vm1465, %v1396, 0
      %v1470 = vsel %vm1465, %v1398, 0
      %1472 = vmatprep.subr.mxu0 %v1400
      %1473 = vmatpush1.msra.mxu0 %v1399
      %1474 = vmatprep.subr.mxu0 %v1403
      %1475 = vmatpush1.msra.mxu0 %v1402
      %1476 = vmatprep.subr.mxu0 %v1406
      %1477 = vmatpush1.msra.mxu0 %v1405
      %1478 = vmatprep.subr.mxu0 %v1409
      %1479 = vmatpush1.msra.mxu0 %v1408
      %1480 = vmatprep.subr.mxu0 %v1412
      %1481 = vmatpush1.msra.mxu0 %v1411
      %1482 = vmatprep.subr.mxu0 %v1415
      %1483 = vmatpush1.msra.mxu0 %v1414
      %1484 = vmatprep.subr.mxu0 %v1418
      %1485 = vmatpush1.msra.mxu0 %v1417
      %1486 = vmatprep.subr.mxu0 %v1421
      %1487 = vmatpush1.msra.mxu0 %v1420
      %1488 = vmatprep.subr.mxu0 %v1424
      %1489 = vmatpush1.msra.mxu0 %v1423
      %1490 = vmatprep.subr.mxu0 %v1427
      %1491 = vmatpush1.msra.mxu0 %v1426
      %1492 = vmatprep.subr.mxu0 %v1430
      %1493 = vmatpush1.msra.mxu0 %v1429
      %1494 = vmatprep.subr.mxu0 %v1433
      %1495 = vmatpush1.msra.mxu0 %v1432
      %1496 = vmatprep.subr.mxu0 %v1436
      %1497 = vmatpush1.msra.mxu0 %v1435
      %1498 = vmatprep.subr.mxu0 %v1439
      %1499 = vmatpush1.msra.mxu0 %v1438
      %1500 = vmatprep.subr.mxu0 %v1442
      %1501 = vmatpush1.msra.mxu0 %v1441
      %1502 = vmatprep.subr.mxu0 %v1445
      %1503 = vmatpush1.msra.mxu0 %v1444
      %1504 = vmatprep.subr.mxu0 %v1448
      %1505 = vmatpush1.msra.mxu0 %v1447
      %1506 = vmatprep.subr.mxu0 %v1451
      %1507 = vmatpush1.msra.mxu0 %v1450
      %1508 = vmatprep.subr.mxu0 0.0
      %1509 = vmatpush1.msra.mxu0 0.0
      %1510 = vmatprep.subr.mxu0 0.0
      %1511 = vmatpush1.msra.mxu0 0.0
      %1512 = vmatprep.subr.mxu0 0.0
      %1513 = vmatpush1.msra.mxu0 0.0
      %1514 = vmatprep.subr.mxu0 0.0
      %1515 = vmatpush1.msra.mxu0 0.0
      %1516 = vmatprep.subr.mxu0 0.0
      %1517 = vmatpush1.msra.mxu0 0.0
      %1518 = vmatprep.subr.mxu0 0.0
      %1519 = vmatpush1.msra.mxu0 0.0
      %1520 = vmatprep.subr.mxu0 0.0
      %1521 = vmatpush1.msra.mxu0 0.0
      %1522 = vmatprep.subr.mxu0 0.0
      %1523 = vmatpush1.msra.mxu0 0.0
      %1524 = vmatprep.subr.mxu0 0.0
      %1525 = vmatpush1.msra.mxu0 0.0
      %1526 = vmatprep.subr.mxu0 0.0
      %1527 = vmatpush1.msra.mxu0 0.0
      %1528 = vmatprep.subr.mxu0 0.0
      %1529 = vmatpush1.msra.mxu0 0.0
      %1530 = vmatprep.subr.mxu0 0.0
      %1531 = vmatpush1.msra.mxu0 0.0
      %1532 = vmatprep.subr.mxu0 0.0
      %1533 = vmatpush1.msra.mxu0 0.0
      %1534 = vmatprep.subr.mxu0 0.0
      %1535 = vmatpush1.msra.mxu0 0.0
      %1536 = vmatprep.mubr.f32.mxu0 %v1467
      %1537 = vmatmul.mubr.f32.gmra.mrb[0].mxu0 %v1395
      %v1538 = vpop.f32.mrb[0].mxu0
      %v1539 = vadd.f32 %v1458, %v1538
      %v1540 = vpop.f32.mrb[0].mxu0
      %v1541 = vadd.f32 %v1458, %v1540
      %1542 = vmatprep.mubr.f32.mxu0 %v1470
      %1543 = vmatmul.mubr.f32.gmra.mrb[0].mxu0 %v1397
      %v1544 = vpop.f32.mrb[0].mxu0
      %v1545 = vadd.f32 %v1463, %v1544
      %v1546 = vpop.f32.mrb[0].mxu0
      %v1547 = vadd.f32 %v1463, %v1546
      %1548 = vdwg.mxu0
      %1549 = vmatprep.subr.mxu0 0.0
      %1550 = vmatpush1.msra.mxu0 %v1401
      %1551 = vmatprep.subr.mxu0 0.0
      %1552 = vmatpush1.msra.mxu0 %v1404
      %1553 = vmatprep.subr.mxu0 0.0
      %1554 = vmatpush1.msra.mxu0 %v1407
      %1555 = vmatprep.subr.mxu0 0.0
      %1556 = vmatpush1.msra.mxu0 %v1410
      %1557 = vmatprep.subr.mxu0 0.0
      %1558 = vmatpush1.msra.mxu0 %v1413
      %1559 = vmatprep.subr.mxu0 0.0
      %1560 = vmatpush1.msra.mxu0 %v1416
      %1561 = vmatprep.subr.mxu0 0.0
      %1562 = vmatpush1.msra.mxu0 %v1419
      %1563 = vmatprep.subr.mxu0 0.0
      %1564 = vmatpush1.msra.mxu0 %v1422
      %1565 = vmatprep.subr.mxu0 0.0
      %1566 = vmatpush1.msra.mxu0 %v1425
      %1567 = vmatprep.subr.mxu0 0.0
      %1568 = vmatpush1.msra.mxu0 %v1428
      %1569 = vmatprep.subr.mxu0 0.0
      %1570 = vmatpush1.msra.mxu0 %v1431
      %1571 = vmatprep.subr.mxu0 0.0
      %1572 = vmatpush1.msra.mxu0 %v1434
      %1573 = vmatprep.subr.mxu0 0.0
      %1574 = vmatpush1.msra.mxu0 %v1437
      %1575 = vmatprep.subr.mxu0 0.0
      %1576 = vmatpush1.msra.mxu0 %v1440
      %1577 = vmatprep.subr.mxu0 0.0
      %1578 = vmatpush1.msra.mxu0 %v1443
      %1579 = vmatprep.subr.mxu0 0.0
      %1580 = vmatpush1.msra.mxu0 %v1446
      %1581 = vmatprep.subr.mxu0 0.0
      %1582 = vmatpush1.msra.mxu0 %v1449
      %1583 = vmatprep.subr.mxu0 0.0
      %1584 = vmatpush1.msra.mxu0 %v1452
      %1585 = vmatprep.subr.mxu0 0.0
      %1586 = vmatpush1.msra.mxu0 0.0
      %1587 = vmatprep.subr.mxu0 0.0
      %1588 = vmatpush1.msra.mxu0 0.0
      %1589 = vmatprep.subr.mxu0 0.0
      %1590 = vmatpush1.msra.mxu0 0.0
      %1591 = vmatprep.subr.mxu0 0.0
      %1592 = vmatpush1.msra.mxu0 0.0
      %1593 = vmatprep.subr.mxu0 0.0
      %1594 = vmatpush1.msra.mxu0 0.0
      %1595 = vmatprep.subr.mxu0 0.0
      %1596 = vmatpush1.msra.mxu0 0.0
      %1597 = vmatprep.subr.mxu0 0.0
      %1598 = vmatpush1.msra.mxu0 0.0
      %1599 = vmatprep.subr.mxu0 0.0
      %1600 = vmatpush1.msra.mxu0 0.0
      %1601 = vmatprep.subr.mxu0 0.0
      %1602 = vmatpush1.msra.mxu0 0.0
      %1603 = vmatprep.subr.mxu0 0.0
      %1604 = vmatpush1.msra.mxu0 0.0
      %1605 = vmatprep.subr.mxu0 0.0
      %1606 = vmatpush1.msra.mxu0 0.0
      %1607 = vmatprep.subr.mxu0 0.0
      %1608 = vmatpush1.msra.mxu0 0.0
      %1609 = vmatprep.subr.mxu0 0.0
      %1610 = vmatpush1.msra.mxu0 0.0
      %1611 = vmatprep.subr.mxu0 0.0
      %1612 = vmatpush1.msra.mxu0 0.0
      %1613 = vmatprep.mubr.f32.mxu0 %v1467
      %1614 = vmatmul.mubr.f32.gmra.mrb[0].mxu0 %v1395
      %v1615 = vpop.f32.mrb[0].mxu0
      %v1616 = vadd.f32 %v1458, %v1615
      %v1617 = vpop.f32.mrb[0].mxu0
      %1618 = vmatprep.mubr.f32.mxu0 %v1470
      %1619 = vmatmul.mubr.f32.gmra.mrb[0].mxu0 %v1397
      %v1620 = vpop.f32.mrb[0].mxu0
      %v1621 = vadd.f32 %v1463, %v1620
      %v1622 = vpop.f32.mrb[0].mxu0
      %1623 = vdwg.mxu0
      %vm1624 = vcmp.ge.f32.partialorder %v1539, 0.0
      %vm1625 = vcmp.ge.f32.partialorder %v1541, 0.0
      %vm1626 = vcmp.ge.f32.partialorder %v1616, 0.0
      %vm1627 = vcmp.ge.f32.partialorder %v1545, 0.0
      %vm1628 = vcmp.ge.f32.partialorder %v1547, 0.0
      %vm1629 = vcmp.ge.f32.partialorder %v1621, 0.0
      %v1630 = vmul.f32 %v1539, 0.01
      %v1631 = vmul.f32 %v1541, 0.01
      %v1632 = vmul.f32 %v1616, 0.01
      %v1633 = vmul.f32 %v1545, 0.01
      %v1634 = vmul.f32 %v1547, 0.01
      %v1635 = vmul.f32 %v1621, 0.01
      %v1636 = vsel %vm1624, %v1539, %v1630
      %v1637 = vsel %vm1625, %v1541, %v1631
      %v1638 = vsel %vm1626, %v1616, %v1632
      %v1639 = vsel %vm1627, %v1545, %v1633
      %v1640 = vsel %vm1628, %v1547, %v1634
      %v1641 = vsel %vm1629, %v1621, %v1635
      %v1642 = vmul.f32 %v1636, %v959
      %v1643 = vmul.f32 %v1637, %v963
      %v1644 = vmul.f32 %v1638, %v967
      %v1645 = vmul.f32 %v1639, %v959
      %v1646 = vmul.f32 %v1640, %v963
      %v1647 = vmul.f32 %v1641, %v967
      %1648 = vst [vmem:[#allocation2 + $0x8] sm:$0xff] %v1642
      %1649 = vst [vmem:[#allocation2 + $0x10] sm:$0xff] %v1643
      %1650 = vst [vmem:[#allocation2 + $0x18] sm:$0xff] %v1644
      %1651 = vst [vmem:[#allocation2 + $0x30] sm:$0xff] %v1645
      %1652 = vst [vmem:[#allocation2 + $0x38] sm:$0xff] %v1646
      %1653 = vst [vmem:[#allocation2 + $0x40] sm:$0xff] %v1647
      %v1654 = vld [vmem:[#allocation2] sm:$0xff]
      %v1655 = vld [vmem:[#allocation2 + $0x8] sm:$0xff]
      %v1656 = vld [vmem:[#allocation2 + $0x10] sm:$0xff]
      %v1657 = vld [vmem:[#allocation2 + $0x18] sm:$0xff]
      %v1658 = vld [vmem:[#allocation2 + $0x28] sm:$0xff]
      %v1659 = vld [vmem:[#allocation2 + $0x30] sm:$0xff]
      %v1660 = vld [vmem:[#allocation2 + $0x38] sm:$0xff]
      %v1661 = vld [vmem:[#allocation2 + $0x40] sm:$0xff]
      %1670 = vrot.lane.b32.xlu0 %v1654, 19
      %v1671 = vpop.permute.xlu0 %1670
      %1672 = vrot.lane.b32.xlu0 %v1655, 19
      %v1673 = vpop.permute.xlu0 %1672
      %1674 = vrot.lane.b32.xlu0 %v1656, 19
      %v1675 = vpop.permute.xlu0 %1674
      %1676 = vrot.lane.b32.xlu0 %v1657, 19
      %v1677 = vpop.permute.xlu0 %1676
      %1678 = vrot.lane.b32.xlu0 %v1658, 19
      %v1679 = vpop.permute.xlu0 %1678
      %1680 = vrot.lane.b32.xlu0 %v1659, 19
      %v1681 = vpop.permute.xlu0 %1680
      %1682 = vrot.lane.b32.xlu0 %v1660, 19
      %v1683 = vpop.permute.xlu0 %1682
      %1684 = vrot.lane.b32.xlu0 %v1661, 19
      %v1685 = vpop.permute.xlu0 %1684
      %v1686 = vsel %vm524, %v1671, %v1673
      %v1687 = vsel %vm524, %v1673, %v1675
      %v1688 = vsel %vm524, %v1675, %v1677
      %v1689 = vsel %vm524, %v1679, %v1681
      %v1690 = vsel %vm524, %v1681, %v1683
      %v1691 = vsel %vm524, %v1683, %v1685
      %1698 = vst [vmem:[#allocation4] sm:$0xff] %v1686
      %1699 = vst [vmem:[#allocation4 + $0x8] sm:$0xff] %v1687
      %1700 = vst [vmem:[#allocation4 + $0x10] sm:$0xff] %v1688
      %1701 = vst [vmem:[#allocation4 + $0x18] sm:$0xff] %v1689
      %1702 = vst [vmem:[#allocation4 + $0x20] sm:$0xff] %v1690
      %1703 = vst [vmem:[#allocation4 + $0x28] sm:$0xff] %v1691
      %v1704 = vld [vmem:[#allocation2] sm:$0xff]
      %v1705 = vld [vmem:[#allocation2 + $0x8] sm:$0xff]
      %v1706 = vld [vmem:[#allocation2 + $0x10] sm:$0xff]
      %v1707 = vld [vmem:[#allocation2 + $0x18] sm:$0xff]
      %v1708 = vld [vmem:[#allocation2 + $0x28] sm:$0xff]
      %v1709 = vld [vmem:[#allocation2 + $0x30] sm:$0xff]
      %v1710 = vld [vmem:[#allocation2 + $0x38] sm:$0xff]
      %v1711 = vld [vmem:[#allocation2 + $0x40] sm:$0xff]
      %1720 = vrot.lane.b32.xlu0 %v1704, 18
      %v1721 = vpop.permute.xlu0 %1720
      %1722 = vrot.lane.b32.xlu0 %v1705, 18
      %v1723 = vpop.permute.xlu0 %1722
      %1724 = vrot.lane.b32.xlu0 %v1706, 18
      %v1725 = vpop.permute.xlu0 %1724
      %1726 = vrot.lane.b32.xlu0 %v1707, 18
      %v1727 = vpop.permute.xlu0 %1726
      %1728 = vrot.lane.b32.xlu0 %v1708, 18
      %v1729 = vpop.permute.xlu0 %1728
      %1730 = vrot.lane.b32.xlu0 %v1709, 18
      %v1731 = vpop.permute.xlu0 %1730
      %1732 = vrot.lane.b32.xlu0 %v1710, 18
      %v1733 = vpop.permute.xlu0 %1732
      %1734 = vrot.lane.b32.xlu0 %v1711, 18
      %v1735 = vpop.permute.xlu0 %1734
      %v1736 = vsel %vm554, %v1721, %v1723
      %v1737 = vsel %vm554, %v1723, %v1725
      %v1738 = vsel %vm554, %v1725, %v1727
      %v1739 = vsel %vm554, %v1729, %v1731
      %v1740 = vsel %vm554, %v1731, %v1733
      %v1741 = vsel %vm554, %v1733, %v1735
      %1748 = vst [vmem:[#allocation4 + $0x30] sm:$0xff] %v1736
      %1749 = vst [vmem:[#allocation4 + $0x38] sm:$0xff] %v1737
      %1750 = vst [vmem:[#allocation4 + $0x40] sm:$0xff] %v1738
      %1751 = vst [vmem:[#allocation4 + $0x48] sm:$0xff] %v1739
      %1752 = vst [vmem:[#allocation4 + $0x50] sm:$0xff] %v1740
      %1753 = vst [vmem:[#allocation4 + $0x58] sm:$0xff] %v1741
      %v1754 = vld [vmem:[#allocation2] sm:$0xff]
      %v1755 = vld [vmem:[#allocation2 + $0x8] sm:$0xff]
      %v1756 = vld [vmem:[#allocation2 + $0x10] sm:$0xff]
      %v1757 = vld [vmem:[#allocation2 + $0x18] sm:$0xff]
      %v1758 = vld [vmem:[#allocation2 + $0x28] sm:$0xff]
      %v1759 = vld [vmem:[#allocation2 + $0x30] sm:$0xff]
      %v1760 = vld [vmem:[#allocation2 + $0x38] sm:$0xff]
      %v1761 = vld [vmem:[#allocation2 + $0x40] sm:$0xff]
      %1770 = vrot.lane.b32.xlu0 %v1754, 17
      %v1771 = vpop.permute.xlu0 %1770
      %1772 = vrot.lane.b32.xlu0 %v1755, 17
      %v1773 = vpop.permute.xlu0 %1772
      %1774 = vrot.lane.b32.xlu0 %v1756, 17
      %v1775 = vpop.permute.xlu0 %1774
      %1776 = vrot.lane.b32.xlu0 %v1757, 17
      %v1777 = vpop.permute.xlu0 %1776
      %1778 = vrot.lane.b32.xlu0 %v1758, 17
      %v1779 = vpop.permute.xlu0 %1778
      %1780 = vrot.lane.b32.xlu0 %v1759, 17
      %v1781 = vpop.permute.xlu0 %1780
      %1782 = vrot.lane.b32.xlu0 %v1760, 17
      %v1783 = vpop.permute.xlu0 %1782
      %1784 = vrot.lane.b32.xlu0 %v1761, 17
      %v1785 = vpop.permute.xlu0 %1784
      %v1786 = vsel %vm584, %v1771, %v1773
      %v1787 = vsel %vm584, %v1773, %v1775
      %v1788 = vsel %vm584, %v1775, %v1777
      %v1789 = vsel %vm584, %v1779, %v1781
      %v1790 = vsel %vm584, %v1781, %v1783
      %v1791 = vsel %vm584, %v1783, %v1785
      %1798 = vst [vmem:[#allocation4 + $0x60] sm:$0xff] %v1786
      %1799 = vst [vmem:[#allocation4 + $0x68] sm:$0xff] %v1787
      %1800 = vst [vmem:[#allocation4 + $0x70] sm:$0xff] %v1788
      %1801 = vst [vmem:[#allocation4 + $0x78] sm:$0xff] %v1789
      %1802 = vst [vmem:[#allocation4 + $0x80] sm:$0xff] %v1790
      %1803 = vst [vmem:[#allocation4 + $0x88] sm:$0xff] %v1791
      %v1804 = vld [vmem:[#allocation2] sm:$0xff]
      %v1805 = vld [vmem:[#allocation2 + $0x8] sm:$0xff]
      %v1806 = vld [vmem:[#allocation2 + $0x10] sm:$0xff]
      %v1807 = vld [vmem:[#allocation2 + $0x18] sm:$0xff]
      %v1808 = vld [vmem:[#allocation2 + $0x28] sm:$0xff]
      %v1809 = vld [vmem:[#allocation2 + $0x30] sm:$0xff]
      %v1810 = vld [vmem:[#allocation2 + $0x38] sm:$0xff]
      %v1811 = vld [vmem:[#allocation2 + $0x40] sm:$0xff]
      %1820 = vrot.lane.b32.xlu0 %v1804, 1
      %v1821 = vpop.permute.xlu0 %1820
      %1822 = vrot.lane.b32.xlu0 %v1805, 1
      %v1823 = vpop.permute.xlu0 %1822
      %1824 = vrot.lane.b32.xlu0 %v1806, 1
      %v1825 = vpop.permute.xlu0 %1824
      %1826 = vrot.lane.b32.xlu0 %v1807, 1
      %v1827 = vpop.permute.xlu0 %1826
      %1828 = vrot.lane.b32.xlu0 %v1808, 1
      %v1829 = vpop.permute.xlu0 %1828
      %1830 = vrot.lane.b32.xlu0 %v1809, 1
      %v1831 = vpop.permute.xlu0 %1830
      %1832 = vrot.lane.b32.xlu0 %v1810, 1
      %v1833 = vpop.permute.xlu0 %1832
      %1834 = vrot.lane.b32.xlu0 %v1811, 1
      %v1835 = vpop.permute.xlu0 %1834
      %v1836 = vsel %vm614, %v1821, %v1823
      %v1837 = vsel %vm614, %v1823, %v1825
      %v1838 = vsel %vm614, %v1825, %v1827
      %v1839 = vsel %vm614, %v1829, %v1831
      %v1840 = vsel %vm614, %v1831, %v1833
      %v1841 = vsel %vm614, %v1833, %v1835
      %1848 = vst [vmem:[#allocation4 + $0x90] sm:$0xff] %v1836
      %1849 = vst [vmem:[#allocation4 + $0x98] sm:$0xff] %v1837
      %1850 = vst [vmem:[#allocation4 + $0xa0] sm:$0xff] %v1838
      %1851 = vst [vmem:[#allocation4 + $0xa8] sm:$0xff] %v1839
      %1852 = vst [vmem:[#allocation4 + $0xb0] sm:$0xff] %v1840
      %1853 = vst [vmem:[#allocation4 + $0xb8] sm:$0xff] %v1841
      %v1854 = vld [vmem:[#allocation2 + $0x8] sm:$0xff]
      %v1855 = vld [vmem:[#allocation2 + $0x10] sm:$0xff]
      %v1856 = vld [vmem:[#allocation2 + $0x18] sm:$0xff]
      %v1857 = vld [vmem:[#allocation2 + $0x30] sm:$0xff]
      %v1858 = vld [vmem:[#allocation2 + $0x38] sm:$0xff]
      %v1859 = vld [vmem:[#allocation2 + $0x40] sm:$0xff]
      %1860 = vst [vmem:[#allocation4 + $0xc0] sm:$0xff] %v1854
      %1861 = vst [vmem:[#allocation4 + $0xc8] sm:$0xff] %v1855
      %1862 = vst [vmem:[#allocation4 + $0xd0] sm:$0xff] %v1856
      %1863 = vst [vmem:[#allocation4 + $0xd8] sm:$0xff] %v1857
      %1864 = vst [vmem:[#allocation4 + $0xe0] sm:$0xff] %v1858
      %1865 = vst [vmem:[#allocation4 + $0xe8] sm:$0xff] %v1859
      %v1866 = vld [vmem:[#allocation2 + $0x8] sm:$0xff]
      %v1867 = vld [vmem:[#allocation2 + $0x10] sm:$0xff]
      %v1868 = vld [vmem:[#allocation2 + $0x18] sm:$0xff]
      %v1869 = vld [vmem:[#allocation2 + $0x20] sm:$0xff]
      %v1870 = vld [vmem:[#allocation2 + $0x30] sm:$0xff]
      %v1871 = vld [vmem:[#allocation2 + $0x38] sm:$0xff]
      %v1872 = vld [vmem:[#allocation2 + $0x40] sm:$0xff]
      %v1873 = vld [vmem:[#allocation2 + $0x48] sm:$0xff]
      %1882 = vrot.lane.b32.xlu0 %v1866, 127
      %v1883 = vpop.permute.xlu0 %1882
      %1884 = vrot.lane.b32.xlu0 %v1867, 127
      %v1885 = vpop.permute.xlu0 %1884
      %1886 = vrot.lane.b32.xlu0 %v1868, 127
      %v1887 = vpop.permute.xlu0 %1886
      %1888 = vrot.lane.b32.xlu0 %v1869, 127
      %v1889 = vpop.permute.xlu0 %1888
      %1890 = vrot.lane.b32.xlu0 %v1870, 127
      %v1891 = vpop.permute.xlu0 %1890
      %1892 = vrot.lane.b32.xlu0 %v1871, 127
      %v1893 = vpop.permute.xlu0 %1892
      %1894 = vrot.lane.b32.xlu0 %v1872, 127
      %v1895 = vpop.permute.xlu0 %1894
      %1896 = vrot.lane.b32.xlu0 %v1873, 127
      %v1897 = vpop.permute.xlu0 %1896
      %v1898 = vsel %vm650, %v1883, %v1885
      %v1899 = vsel %vm650, %v1885, %v1887
      %v1900 = vsel %vm650, %v1887, %v1889
      %v1901 = vsel %vm650, %v1891, %v1893
      %v1902 = vsel %vm650, %v1893, %v1895
      %v1903 = vsel %vm650, %v1895, %v1897
      %1910 = vst [vmem:[#allocation4 + $0xf0] sm:$0xff] %v1898
      %1911 = vst [vmem:[#allocation4 + $0xf8] sm:$0xff] %v1899
      %1912 = vst [vmem:[#allocation4 + $0x100] sm:$0xff] %v1900
      %1913 = vst [vmem:[#allocation4 + $0x108] sm:$0xff] %v1901
      %1914 = vst [vmem:[#allocation4 + $0x110] sm:$0xff] %v1902
      %1915 = vst [vmem:[#allocation4 + $0x118] sm:$0xff] %v1903
      %v1916 = vld [vmem:[#allocation2 + $0x8] sm:$0xff]
      %v1917 = vld [vmem:[#allocation2 + $0x10] sm:$0xff]
      %v1918 = vld [vmem:[#allocation2 + $0x18] sm:$0xff]
      %v1919 = vld [vmem:[#allocation2 + $0x20] sm:$0xff]
      %v1920 = vld [vmem:[#allocation2 + $0x30] sm:$0xff]
      %v1921 = vld [vmem:[#allocation2 + $0x38] sm:$0xff]
      %v1922 = vld [vmem:[#allocation2 + $0x40] sm:$0xff]
      %v1923 = vld [vmem:[#allocation2 + $0x48] sm:$0xff]
      %1932 = vrot.lane.b32.xlu0 %v1916, 111
      %v1933 = vpop.permute.xlu0 %1932
      %1934 = vrot.lane.b32.xlu0 %v1917, 111
      %v1935 = vpop.permute.xlu0 %1934
      %1936 = vrot.lane.b32.xlu0 %v1918, 111
      %v1937 = vpop.permute.xlu0 %1936
      %1938 = vrot.lane.b32.xlu0 %v1919, 111
      %v1939 = vpop.permute.xlu0 %1938
      %1940 = vrot.lane.b32.xlu0 %v1920, 111
      %v1941 = vpop.permute.xlu0 %1940
      %1942 = vrot.lane.b32.xlu0 %v1921, 111
      %v1943 = vpop.permute.xlu0 %1942
      %1944 = vrot.lane.b32.xlu0 %v1922, 111
      %v1945 = vpop.permute.xlu0 %1944
      %1946 = vrot.lane.b32.xlu0 %v1923, 111
      %v1947 = vpop.permute.xlu0 %1946
      %v1948 = vsel %vm680, %v1933, %v1935
      %v1949 = vsel %vm680, %v1935, %v1937
      %v1950 = vsel %vm680, %v1937, %v1939
      %v1951 = vsel %vm680, %v1941, %v1943
      %v1952 = vsel %vm680, %v1943, %v1945
      %v1953 = vsel %vm680, %v1945, %v1947
      %1960 = vst [vmem:[#allocation4 + $0x120] sm:$0xff] %v1948
      %1961 = vst [vmem:[#allocation4 + $0x128] sm:$0xff] %v1949
      %1962 = vst [vmem:[#allocation4 + $0x130] sm:$0xff] %v1950
      %1963 = vst [vmem:[#allocation4 + $0x138] sm:$0xff] %v1951
      %1964 = vst [vmem:[#allocation4 + $0x140] sm:$0xff] %v1952
      %1965 = vst [vmem:[#allocation4 + $0x148] sm:$0xff] %v1953
      %v1966 = vld [vmem:[#allocation2 + $0x8] sm:$0xff]
      %v1967 = vld [vmem:[#allocation2 + $0x10] sm:$0xff]
      %v1968 = vld [vmem:[#allocation2 + $0x18] sm:$0xff]
      %v1969 = vld [vmem:[#allocation2 + $0x20] sm:$0xff]
      %v1970 = vld [vmem:[#allocation2 + $0x30] sm:$0xff]
      %v1971 = vld [vmem:[#allocation2 + $0x38] sm:$0xff]
      %v1972 = vld [vmem:[#allocation2 + $0x40] sm:$0xff]
      %v1973 = vld [vmem:[#allocation2 + $0x48] sm:$0xff]
      %1982 = vrot.lane.b32.xlu0 %v1966, 110
      %v1983 = vpop.permute.xlu0 %1982
      %1984 = vrot.lane.b32.xlu0 %v1967, 110
      %v1985 = vpop.permute.xlu0 %1984
      %1986 = vrot.lane.b32.xlu0 %v1968, 110
      %v1987 = vpop.permute.xlu0 %1986
      %1988 = vrot.lane.b32.xlu0 %v1969, 110
      %v1989 = vpop.permute.xlu0 %1988
      %1990 = vrot.lane.b32.xlu0 %v1970, 110
      %v1991 = vpop.permute.xlu0 %1990
      %1992 = vrot.lane.b32.xlu0 %v1971, 110
      %v1993 = vpop.permute.xlu0 %1992
      %1994 = vrot.lane.b32.xlu0 %v1972, 110
      %v1995 = vpop.permute.xlu0 %1994
      %1996 = vrot.lane.b32.xlu0 %v1973, 110
      %v1997 = vpop.permute.xlu0 %1996
      %v1998 = vsel %vm710, %v1983, %v1985
      %v1999 = vsel %vm710, %v1985, %v1987
      %v2000 = vsel %vm710, %v1987, %v1989
      %v2001 = vsel %vm710, %v1991, %v1993
      %v2002 = vsel %vm710, %v1993, %v1995
      %v2003 = vsel %vm710, %v1995, %v1997
      %2010 = vst [vmem:[#allocation4 + $0x150] sm:$0xff] %v1998
      %2011 = vst [vmem:[#allocation4 + $0x158] sm:$0xff] %v1999
      %2012 = vst [vmem:[#allocation4 + $0x160] sm:$0xff] %v2000
      %2013 = vst [vmem:[#allocation4 + $0x168] sm:$0xff] %v2001
      %2014 = vst [vmem:[#allocation4 + $0x170] sm:$0xff] %v2002
      %2015 = vst [vmem:[#allocation4 + $0x178] sm:$0xff] %v2003
      %v2016 = vld [vmem:[#allocation2 + $0x8] sm:$0xff]
      %v2017 = vld [vmem:[#allocation2 + $0x10] sm:$0xff]
      %v2018 = vld [vmem:[#allocation2 + $0x18] sm:$0xff]
      %v2019 = vld [vmem:[#allocation2 + $0x20] sm:$0xff]
      %v2020 = vld [vmem:[#allocation2 + $0x30] sm:$0xff]
      %v2021 = vld [vmem:[#allocation2 + $0x38] sm:$0xff]
      %v2022 = vld [vmem:[#allocation2 + $0x40] sm:$0xff]
      %v2023 = vld [vmem:[#allocation2 + $0x48] sm:$0xff]
      %2032 = vrot.lane.b32.xlu0 %v2016, 109
      %v2033 = vpop.permute.xlu0 %2032
      %2034 = vrot.lane.b32.xlu0 %v2017, 109
      %v2035 = vpop.permute.xlu0 %2034
      %2036 = vrot.lane.b32.xlu0 %v2018, 109
      %v2037 = vpop.permute.xlu0 %2036
      %2038 = vrot.lane.b32.xlu0 %v2019, 109
      %v2039 = vpop.permute.xlu0 %2038
      %2040 = vrot.lane.b32.xlu0 %v2020, 109
      %v2041 = vpop.permute.xlu0 %2040
      %2042 = vrot.lane.b32.xlu0 %v2021, 109
      %v2043 = vpop.permute.xlu0 %2042
      %2044 = vrot.lane.b32.xlu0 %v2022, 109
      %v2045 = vpop.permute.xlu0 %2044
      %2046 = vrot.lane.b32.xlu0 %v2023, 109
      %v2047 = vpop.permute.xlu0 %2046
      %v2048 = vsel %vm736, %v2033, %v2035
      %v2049 = vsel %vm736, %v2035, %v2037
      %v2050 = vsel %vm736, %v2037, %v2039
      %v2051 = vsel %vm736, %v2041, %v2043
      %v2052 = vsel %vm736, %v2043, %v2045
      %v2053 = vsel %vm736, %v2045, %v2047
      %2060 = vst [vmem:[#allocation4 + $0x180] sm:$0xff] %v2048
      %2061 = vst [vmem:[#allocation4 + $0x188] sm:$0xff] %v2049
      %2062 = vst [vmem:[#allocation4 + $0x190] sm:$0xff] %v2050
      %2063 = vst [vmem:[#allocation4 + $0x198] sm:$0xff] %v2051
      %2064 = vst [vmem:[#allocation4 + $0x1a0] sm:$0xff] %v2052
      %2065 = vst [vmem:[#allocation4 + $0x1a8] sm:$0xff] %v2053
      %v2066 = vld [vmem:[%s6] sm:$0xf]
      %v2067 = vld [vmem:[#allocation4] sm:$0xff]
      %v2068 = vld [vmem:[#allocation4 + $0x8] sm:$0xff]
      %v2069 = vld [vmem:[#allocation4 + $0x10] sm:$0xff]
      %v2070 = vld [vmem:[#allocation4 + $0x18] sm:$0xff]
      %v2071 = vld [vmem:[#allocation4 + $0x20] sm:$0xff]
      %v2072 = vld [vmem:[#allocation4 + $0x28] sm:$0xff]
      %v2073 = vld [vmem:[#allocation4 + $0x30] sm:$0xff]
      %v2074 = vld [vmem:[#allocation4 + $0x38] sm:$0xff]
      %v2075 = vld [vmem:[#allocation4 + $0x40] sm:$0xff]
      %v2076 = vld [vmem:[#allocation4 + $0x48] sm:$0xff]
      %v2077 = vld [vmem:[#allocation4 + $0x50] sm:$0xff]
      %v2078 = vld [vmem:[#allocation4 + $0x58] sm:$0xff]
      %v2079 = vld [vmem:[#allocation4 + $0x60] sm:$0xff]
      %v2080 = vld [vmem:[#allocation4 + $0x68] sm:$0xff]
      %v2081 = vld [vmem:[#allocation4 + $0x70] sm:$0xff]
      %v2082 = vld [vmem:[#allocation4 + $0x78] sm:$0xff]
      %v2083 = vld [vmem:[#allocation4 + $0x80] sm:$0xff]
      %v2084 = vld [vmem:[#allocation4 + $0x88] sm:$0xff]
      %v2085 = vld [vmem:[#allocation4 + $0x90] sm:$0xff]
      %v2086 = vld [vmem:[#allocation4 + $0x98] sm:$0xff]
      %v2087 = vld [vmem:[#allocation4 + $0xa0] sm:$0xff]
      %v2088 = vld [vmem:[#allocation4 + $0xa8] sm:$0xff]
      %v2089 = vld [vmem:[#allocation4 + $0xb0] sm:$0xff]
      %v2090 = vld [vmem:[#allocation4 + $0xb8] sm:$0xff]
      %v2091 = vld [vmem:[#allocation4 + $0xc0] sm:$0xff]
      %v2092 = vld [vmem:[#allocation4 + $0xc8] sm:$0xff]
      %v2093 = vld [vmem:[#allocation4 + $0xd0] sm:$0xff]
      %v2094 = vld [vmem:[#allocation4 + $0xd8] sm:$0xff]
      %v2095 = vld [vmem:[#allocation4 + $0xe0] sm:$0xff]
      %v2096 = vld [vmem:[#allocation4 + $0xe8] sm:$0xff]
      %v2097 = vld [vmem:[#allocation4 + $0xf0] sm:$0xff]
      %v2098 = vld [vmem:[#allocation4 + $0xf8] sm:$0xff]
      %v2099 = vld [vmem:[#allocation4 + $0x100] sm:$0xff]
      %v2100 = vld [vmem:[#allocation4 + $0x108] sm:$0xff]
      %v2101 = vld [vmem:[#allocation4 + $0x110] sm:$0xff]
      %v2102 = vld [vmem:[#allocation4 + $0x118] sm:$0xff]
      %v2103 = vld [vmem:[#allocation4 + $0x120] sm:$0xff]
      %v2104 = vld [vmem:[#allocation4 + $0x128] sm:$0xff]
      %v2105 = vld [vmem:[#allocation4 + $0x130] sm:$0xff]
      %v2106 = vld [vmem:[#allocation4 + $0x138] sm:$0xff]
      %v2107 = vld [vmem:[#allocation4 + $0x140] sm:$0xff]
      %v2108 = vld [vmem:[#allocation4 + $0x148] sm:$0xff]
      %v2109 = vld [vmem:[#allocation4 + $0x150] sm:$0xff]
      %v2110 = vld [vmem:[#allocation4 + $0x158] sm:$0xff]
      %v2111 = vld [vmem:[#allocation4 + $0x160] sm:$0xff]
      %v2112 = vld [vmem:[#allocation4 + $0x168] sm:$0xff]
      %v2113 = vld [vmem:[#allocation4 + $0x170] sm:$0xff]
      %v2114 = vld [vmem:[#allocation4 + $0x178] sm:$0xff]
      %v2115 = vld [vmem:[#allocation4 + $0x180] sm:$0xff]
      %v2116 = vld [vmem:[#allocation4 + $0x188] sm:$0xff]
      %v2117 = vld [vmem:[#allocation4 + $0x190] sm:$0xff]
      %v2118 = vld [vmem:[#allocation4 + $0x198] sm:$0xff]
      %v2119 = vld [vmem:[#allocation4 + $0x1a0] sm:$0xff]
      %v2120 = vld [vmem:[#allocation4 + $0x1a8] sm:$0xff]
      %v2121 = vld [vmem:[%s7] sm:$0x3]
      %2123 = vset.pattern.permute.xlu0 0
      %2124 = vperm.xlu0 %2123, %v2121
      %v2125 = vpop.permute.xlu0 %2124
      %v2129 = vunpack.c.l.s4 1983009808
      %v2130 = vunpack.c.0.s8 %v2129
      %v2131 = vlaneseq
      %v2132 = vshrl.u32 %v2131, 7
      %v2133 = vsub.s32 %v2130, %v2132
      %v2134 = vrot.slane %v2066, %v2133
      %v2135 = vcombine.high %v2134, %v2134
      %v2137 = vsel %vm1465, %v2135, 0
      %2139 = vmatprep.subr.mxu0 %v2068
      %2140 = vmatpush1.msra.mxu0 %v2067
      %2141 = vmatprep.subr.mxu0 %v2071
      %2142 = vmatpush1.msra.mxu0 %v2070
      %2143 = vmatprep.subr.mxu0 %v2074
      %2144 = vmatpush1.msra.mxu0 %v2073
      %2145 = vmatprep.subr.mxu0 %v2077
      %2146 = vmatpush1.msra.mxu0 %v2076
      %2147 = vmatprep.subr.mxu0 %v2080
      %2148 = vmatpush1.msra.mxu0 %v2079
      %2149 = vmatprep.subr.mxu0 %v2083
      %2150 = vmatpush1.msra.mxu0 %v2082
      %2151 = vmatprep.subr.mxu0 %v2086
      %2152 = vmatpush1.msra.mxu0 %v2085
      %2153 = vmatprep.subr.mxu0 %v2089
      %2154 = vmatpush1.msra.mxu0 %v2088
      %2155 = vmatprep.subr.mxu0 %v2092
      %2156 = vmatpush1.msra.mxu0 %v2091
      %2157 = vmatprep.subr.mxu0 %v2095
      %2158 = vmatpush1.msra.mxu0 %v2094
      %2159 = vmatprep.subr.mxu0 %v2098
      %2160 = vmatpush1.msra.mxu0 %v2097
      %2161 = vmatprep.subr.mxu0 %v2101
      %2162 = vmatpush1.msra.mxu0 %v2100
      %2163 = vmatprep.subr.mxu0 %v2104
      %2164 = vmatpush1.msra.mxu0 %v2103
      %2165 = vmatprep.subr.mxu0 %v2107
      %2166 = vmatpush1.msra.mxu0 %v2106
      %2167 = vmatprep.subr.mxu0 %v2110
      %2168 = vmatpush1.msra.mxu0 %v2109
      %2169 = vmatprep.subr.mxu0 %v2113
      %2170 = vmatpush1.msra.mxu0 %v2112
      %2171 = vmatprep.subr.mxu0 %v2116
      %2172 = vmatpush1.msra.mxu0 %v2115
      %2173 = vmatprep.subr.mxu0 %v2119
      %2174 = vmatpush1.msra.mxu0 %v2118
      %2175 = vmatprep.subr.mxu0 0.0
      %2176 = vmatpush1.msra.mxu0 0.0
      %2177 = vmatprep.subr.mxu0 0.0
      %2178 = vmatpush1.msra.mxu0 0.0
      %2179 = vmatprep.subr.mxu0 0.0
      %2180 = vmatpush1.msra.mxu0 0.0
      %2181 = vmatprep.subr.mxu0 0.0
      %2182 = vmatpush1.msra.mxu0 0.0
      %2183 = vmatprep.subr.mxu0 0.0
      %2184 = vmatpush1.msra.mxu0 0.0
      %2185 = vmatprep.subr.mxu0 0.0
      %2186 = vmatpush1.msra.mxu0 0.0
      %2187 = vmatprep.subr.mxu0 0.0
      %2188 = vmatpush1.msra.mxu0 0.0
      %2189 = vmatprep.subr.mxu0 0.0
      %2190 = vmatpush1.msra.mxu0 0.0
      %2191 = vmatprep.subr.mxu0 0.0
      %2192 = vmatpush1.msra.mxu0 0.0
      %2193 = vmatprep.subr.mxu0 0.0
      %2194 = vmatpush1.msra.mxu0 0.0
      %2195 = vmatprep.subr.mxu0 0.0
      %2196 = vmatpush1.msra.mxu0 0.0
      %2197 = vmatprep.subr.mxu0 0.0
      %2198 = vmatpush1.msra.mxu0 0.0
      %2199 = vmatprep.subr.mxu0 0.0
      %2200 = vmatpush1.msra.mxu0 0.0
      %2201 = vmatprep.subr.mxu0 0.0
      %2202 = vmatpush1.msra.mxu0 0.0
      %2203 = vmatprep.mubr.f32.mxu0 %v2137
      %2204 = vmatmul.mubr.f32.gmra.mrb[0].mxu0 %v2134
      %v2205 = vpop.f32.mrb[0].mxu0
      %v2206 = vadd.f32 %v2125, %v2205
      %v2207 = vpop.f32.mrb[0].mxu0
      %v2208 = vadd.f32 %v2125, %v2207
      %2209 = vdwg.mxu0
      %2210 = vmatprep.subr.mxu0 0.0
      %2211 = vmatpush1.msra.mxu0 %v2069
      %2212 = vmatprep.subr.mxu0 0.0
      %2213 = vmatpush1.msra.mxu0 %v2072
      %2214 = vmatprep.subr.mxu0 0.0
      %2215 = vmatpush1.msra.mxu0 %v2075
      %2216 = vmatprep.subr.mxu0 0.0
      %2217 = vmatpush1.msra.mxu0 %v2078
      %2218 = vmatprep.subr.mxu0 0.0
      %2219 = vmatpush1.msra.mxu0 %v2081
      %2220 = vmatprep.subr.mxu0 0.0
      %2221 = vmatpush1.msra.mxu0 %v2084
      %2222 = vmatprep.subr.mxu0 0.0
      %2223 = vmatpush1.msra.mxu0 %v2087
      %2224 = vmatprep.subr.mxu0 0.0
      %2225 = vmatpush1.msra.mxu0 %v2090
      %2226 = vmatprep.subr.mxu0 0.0
      %2227 = vmatpush1.msra.mxu0 %v2093
      %2228 = vmatprep.subr.mxu0 0.0
      %2229 = vmatpush1.msra.mxu0 %v2096
      %2230 = vmatprep.subr.mxu0 0.0
      %2231 = vmatpush1.msra.mxu0 %v2099
      %2232 = vmatprep.subr.mxu0 0.0
      %2233 = vmatpush1.msra.mxu0 %v2102
      %2234 = vmatprep.subr.mxu0 0.0
      %2235 = vmatpush1.msra.mxu0 %v2105
      %2236 = vmatprep.subr.mxu0 0.0
      %2237 = vmatpush1.msra.mxu0 %v2108
      %2238 = vmatprep.subr.mxu0 0.0
      %2239 = vmatpush1.msra.mxu0 %v2111
      %2240 = vmatprep.subr.mxu0 0.0
      %2241 = vmatpush1.msra.mxu0 %v2114
      %2242 = vmatprep.subr.mxu0 0.0
      %2243 = vmatpush1.msra.mxu0 %v2117
      %2244 = vmatprep.subr.mxu0 0.0
      %2245 = vmatpush1.msra.mxu0 %v2120
      %2246 = vmatprep.subr.mxu0 0.0
      %2247 = vmatpush1.msra.mxu0 0.0
      %2248 = vmatprep.subr.mxu0 0.0
      %2249 = vmatpush1.msra.mxu0 0.0
      %2250 = vmatprep.subr.mxu0 0.0
      %2251 = vmatpush1.msra.mxu0 0.0
      %2252 = vmatprep.subr.mxu0 0.0
      %2253 = vmatpush1.msra.mxu0 0.0
      %2254 = vmatprep.subr.mxu0 0.0
      %2255 = vmatpush1.msra.mxu0 0.0
      %2256 = vmatprep.subr.mxu0 0.0
      %2257 = vmatpush1.msra.mxu0 0.0
      %2258 = vmatprep.subr.mxu0 0.0
      %2259 = vmatpush1.msra.mxu0 0.0
      %2260 = vmatprep.subr.mxu0 0.0
      %2261 = vmatpush1.msra.mxu0 0.0
      %2262 = vmatprep.subr.mxu0 0.0
      %2263 = vmatpush1.msra.mxu0 0.0
      %2264 = vmatprep.subr.mxu0 0.0
      %2265 = vmatpush1.msra.mxu0 0.0
      %2266 = vmatprep.subr.mxu0 0.0
      %2267 = vmatpush1.msra.mxu0 0.0
      %2268 = vmatprep.subr.mxu0 0.0
      %2269 = vmatpush1.msra.mxu0 0.0
      %2270 = vmatprep.subr.mxu0 0.0
      %2271 = vmatpush1.msra.mxu0 0.0
      %2272 = vmatprep.subr.mxu0 0.0
      %2273 = vmatpush1.msra.mxu0 0.0
      %2274 = vmatprep.mubr.f32.mxu0 %v2137
      %2275 = vmatmul.mubr.f32.gmra.mrb[0].mxu0 %v2134
      %v2276 = vpop.f32.mrb[0].mxu0
      %v2277 = vadd.f32 %v2125, %v2276
      %v2278 = vpop.f32.mrb[0].mxu0
      %2279 = vdwg.mxu0
      %v2280 = vmul.f32 %v2206, %v959
      %v2281 = vmul.f32 %v2208, %v963
      %v2282 = vmul.f32 %v2277, %v967
      %v2286 = vcombine.low %v2280, %v2281
      %v2288 = vunpack.c.l.s4 1983009808
      %v2289 = vunpack.c.0.s8 %v2288
      %v2290 = vlaneseq
      %v2291 = vshrl.u32 %v2290, 7
      %v2292 = vsub.s32 %v2289, %v2291
      %v2293 = vrot.slane %v2286, %v2292
      %v2295 = vunpack.c.l.s4 1983009808
      %v2296 = vunpack.c.0.s8 %v2295
      %v2297 = vlaneseq
      %v2298 = vshrl.u32 %v2297, 7
      %v2299 = vsub.s32 %v2296, %v2298
      %v2300 = vrot.slane %v2282, %v2299
      %v2301 = vcombine.low %v2293, %v2300
      %2303 = vst [vmem:[%s305] sm:$0x3f] %v2301
      %p2304 = scmp.lt.s32.totalorder %s19, 1
      %s2305 = scalar_select %p2304, %s19, 1
      %s2306 = smul.addr %s2305, 3
      %s2307 = smul.addr %s2306, 2
      %s2308 = scalar_lea.vmem %s8, %s2307
      // Predicated region
      $region53: #{conv_block_forward.1} parent=51 // pred_check
        %p2309 = pneg %p210
      $region54: #{conv_block_forward.1} parent=51 // pred_check_branch
        %2311 = sbr.rel (%p2309) target = $region56
      $region55: #{conv_block_forward.1} parent=51 // pred_region
        _
      $region56: #{conv_block_forward.1} parent=51 // pred_fallthru
        _
    $region52: #{conv_block_forward.1} parent=5 // pred_fallthru
      _
    %p2312 = scmp.le.s32.totalorder 2, %s14
    // Predicated region
    $region57: #{conv_block_forward.1} parent=5 // pred_check
      %p2313 = pneg %p2312
    $region58: #{conv_block_forward.1} parent=5 // pred_check_branch
      %2315 = sbr.rel (%p2313) target = $region60
    $region59: #{conv_block_forward.1} parent=5 // pred_region
      %s2316 = ssub.s32 %s14, 2
      // Predicated region
      $region61: #{conv_block_forward.1} parent=59 // pred_check
        %p2317 = pneg %p216
      $region62: #{conv_block_forward.1} parent=59 // pred_check_branch
        %2319 = sbr.rel (%p2317) target = $region64
      $region63: #{conv_block_forward.1} parent=59 // pred_region
        %p2320 = scmp.lt.s32.totalorder %s20, 1
        %s2321 = scalar_select %p2320, %s20, 1
        %s2322 = smul.addr %s2321, 3
        %s2323 = smul.addr %s2322, 2
        %s2324 = scalar_lea.vmem %s8, %s2323
      $region64: #{conv_block_forward.1} parent=59 // pred_fallthru
        _
    $region60: #{conv_block_forward.1} parent=5 // pred_fallthru
      _
  $region6: #{conv_block_forward.1} parent=0 // loop_footer
    %s18 = sadd.s32 1, %s14
  $region7: #{conv_block_forward.1} parent=0 // loop_footer_branch
    %13 = sbr.rel target = $region3
  $region8: #{conv_block_forward.1} parent=0 // loop_exit
    _

</llo_original>
